<compile_context>
chip_gen: v7x
topology: tpu7x:2x2x1
jax: 0.10.0
libtpu: 0.0.40
codegen_flags: <defaults>
</compile_context>

<pallas_src>
import jax
import jax.numpy as jnp
from jax import lax
from jax.experimental import pallas as pl
from jax.experimental.pallas import tpu as pltpu


def _resblock_kernel(x_ref, w1_ref, b1_ref, w2_ref, b2_ref, out_ref):
    """One batch-block per grid step.

    x_ref  : (B_blk, H, W*Cin)      bf16, (W,C)-fused lane layout
    w1_ref : (3*W*Cin, W*Cout)      bf16, K-stacked block-banded conv1 (BN1 scale folded)
    b1_ref : (1, W*Cout)            f32,  BN1 bias tiled across W
    w2_ref : (3*W*Cout, W*Cout)     bf16, K-stacked block-banded conv2 (BN2 scale folded)
    b2_ref : (1, W*Cout)            f32,  BN2 bias tiled across W
    out_ref: (B_blk, H, W*Cout)     bf16
    """
    B, H, WC_in = x_ref.shape
    WC_out = out_ref.shape[2]
    M = B * H

    # Per-image dy-halo masks: row h-1 invalid when (row % H) == 0, row h+1
    # invalid when (row % H) == H-1.  Also kills the roll wraparound rows.
    row = lax.broadcasted_iota(jnp.int32, (M, 1), 0)
    keep_up = (row % H) != 0
    keep_dn = (row % H) != (H - 1)

    def conv3x3(v32, w_ref):
        # v32: (M, WC) f32.  dy taps handled by sublane rolls + halo mask; the
        # dx taps and W-edge padding live inside the banded weight.  One dot,
        # K = 3*WC, f32 accumulation.
        v_up = jnp.where(keep_up, pltpu.roll(v32, shift=1, axis=0), 0.0)
        v_dn = jnp.where(keep_dn, pltpu.roll(v32, shift=M - 1, axis=0), 0.0)
        stacked = jnp.concatenate([v_up, v32, v_dn], axis=1).astype(jnp.bfloat16)
        return jnp.dot(stacked, w_ref[...], preferred_element_type=jnp.float32)

    # conv1 -> BN1 (bias only; scale folded into weights) -> ReLU
    x32 = x_ref[...].reshape(M, WC_in).astype(jnp.float32)
    mid = jnp.maximum(conv3x3(x32, w1_ref) + b1_ref[...], 0.0)

    # conv2 -> BN2 -> + identity -> ReLU  (re-read x for the residual)
    resid = x_ref[...].reshape(M, WC_in).astype(jnp.float32)
    out = jnp.maximum(conv3x3(mid, w2_ref) + b2_ref[...] + resid, 0.0)
    out_ref[...] = out.reshape(B, H, WC_out).astype(out_ref.dtype)


def _const_spec(shape):
    """BlockSpec for a grid-invariant operand; single-buffered when supported."""
    idx = lambda n: (0,) * len(shape)
    try:
        return pl.BlockSpec(shape, idx, pipeline_mode=pl.Buffered(1))
    except TypeError:  # older jax without pipeline_mode kwarg
        return pl.BlockSpec(shape, idx)


def _pick_batch_block(N, H, WC_in, WC_out, vmem_limit, target_rows=256):
    """Largest batch block s.t. M = B_blk*H >= target rows and buffers fit VMEM."""
    b = max(1, min(N, max(1, target_rows // H)))
    per_img = H * (WC_in + WC_out) * 2 * 2  # bf16 in+out blocks, double-buffered
    while b > 1 and b * per_img > vmem_limit // 4:
        b -= 1
    return b


def residual_block_forward(x_nchw, w1_oihw, bn1, w2_oihw, bn2, eps=1e-5):
    """Pallas ResidualBlock forward.  x_nchw: (N, C, H, W) float32."""
    N, Cin, H, W = x_nchw.shape
    Cout = w1_oihw.shape[0]
    assert Cin == Cout, "stride=1 / no-downsample block requires Cin == Cout"

    # --- glue: BN folding (scale into weights, keep bias) ---
    def fold(bn):
        gamma, beta, rmean, rvar = bn
        scale = gamma * lax.rsqrt(rvar + eps)
        return scale, beta - rmean * scale

    s1, b1 = fold(bn1)
    s2, b2 = fold(bn2)

    # OIHW -> HWIO, fold BN scale over the Cout axis.
    w1_hwio = jnp.transpose(w1_oihw, (2, 3, 1, 0)).astype(jnp.float32) * s1[None, None, None, :]
    w2_hwio = jnp.transpose(w2_oihw, (2, 3, 1, 0)).astype(jnp.float32) * s2[None, None, None, :]

    def build_banded_kstacked(w_hwio):
        """(3,3,Cin,Cout) -> (3*W*Cin, W*Cout) K-stacked block-banded matrix.

        banded[dy, win*Cin+ci, wout*Cout+co] = w[dy, win-wout+1, ci, co]
        when |win - wout| <= 1, else 0 (encodes the W-edge zero padding);
        the three dy blocks are stacked along K to match [v_up, v, v_dn].
        """
        KH, KW, ci, co = w_hwio.shape
        win = jnp.arange(W)[:, None]
        wout = jnp.arange(W)[None, :]
        tap = win - wout + (KW // 2)
        valid = (tap >= 0) & (tap <= KW - 1)
        tap = jnp.clip(tap, 0, KW - 1)
        blocks = w_hwio[:, tap, :, :]                       # (KH, W, W, ci, co)
        blocks = jnp.where(valid[None, :, :, None, None], blocks, 0.0)
        banded = jnp.transpose(blocks, (0, 1, 3, 2, 4)).reshape(KH, W * ci, W * co)
        return banded.reshape(KH * W * ci, W * co).astype(jnp.bfloat16)

    wb1 = build_banded_kstacked(w1_hwio)
    wb2 = build_banded_kstacked(w2_hwio)
    bb1 = jnp.tile(b1, W).reshape(1, W * Cout).astype(jnp.float32)
    bb2 = jnp.tile(b2, W).reshape(1, W * Cout).astype(jnp.float32)

    WC_in = W * Cin
    WC_out = W * Cout   # multiple of 128 here -> unmasked lane-dense stores

    # --- glue: layout NCHW -> (N, H, W*C) bf16 fused lane layout ---
    x_fused = jnp.transpose(x_nchw, (0, 2, 3, 1)).reshape(N, H, WC_in).astype(jnp.bfloat16)

    # Generation-aware VMEM budget: ~3/4 of physical (96 MiB v5e/v6e, 48 MiB v7x).
    try:
        vmem_cap = int(pltpu.get_tpu_info().vmem_capacity_bytes)
    except Exception:
        vmem_cap = 128 * 1024 * 1024
    vmem_limit = min(100 * 1024 * 1024, (vmem_cap * 3) // 4)

    B_blk = _pick_batch_block(N, H, WC_in, WC_out, vmem_limit)
    n_blocks = pl.cdiv(N, B_blk)
    N_pad = n_blocks * B_blk
    if N_pad != N:
        x_fused = jnp.pad(x_fused, ((0, N_pad - N), (0, 0), (0, 0)))

    grid_spec = pltpu.PrefetchScalarGridSpec(
        num_scalar_prefetch=0,
        grid=(n_blocks,),
        in_specs=[
            pl.BlockSpec((B_blk, H, WC_in), lambda n: (n, 0, 0)),
            _const_spec((3 * WC_in, WC_out)),
            _const_spec((1, WC_out)),
            _const_spec((3 * WC_out, WC_out)),
            _const_spec((1, WC_out)),
        ],
        out_specs=pl.BlockSpec((B_blk, H, WC_out), lambda n: (n, 0, 0)),
    )

    out_fused = pl.pallas_call(
        _resblock_kernel,
        out_shape=jax.ShapeDtypeStruct((N_pad, H, WC_out), jnp.bfloat16),
        grid_spec=grid_spec,
        compiler_params=pltpu.CompilerParams(
            dimension_semantics=("parallel",),
            vmem_limit_bytes=vmem_limit),
    )(x_fused, wb1, bb1, wb2, bb2)

    out_fused = out_fused[:N]
    return jnp.transpose(out_fused.reshape(N, H, W, Cout), (0, 3, 1, 2)).astype(jnp.float32)


def _reference_forward(x, w1_oihw, bn1, w2_oihw, bn2, eps=1e-5):
    """Pure-JAX reference (NCHW), mirrors the PyTorch module in eval mode."""
    def bn_apply(y, bn):
        gamma, beta, rmean, rvar = bn
        scale = gamma * lax.rsqrt(rvar + eps)
        bias = beta - rmean * scale
        return y * scale[None, :, None, None] + bias[None, :, None, None]

    dn = ("NCHW", "OIHW", "NCHW")
    y = lax.conv_general_dilated(x, w1_oihw, (1, 1), "SAME", dimension_numbers=dn)
    y = jnp.maximum(bn_apply(y, bn1), 0.0)
    y = lax.conv_general_dilated(y, w2_oihw, (1, 1), "SAME", dimension_numbers=dn)
    y = bn_apply(y, bn2) + x
    return jnp.maximum(y, 0.0)


if __name__ == "__main__":
    # W * C = 16 * 8 = 128 -> lane-dense slabs; N = 8 images fused per grid
    # step so each MXU dot is (128, 384) x (384, 128).
    N, C, H, W = 8, 8, 16, 16
    key = jax.random.PRNGKey(0)
    ks = jax.random.split(key, 10)

    x = jax.random.normal(ks[0], (N, C, H, W), jnp.float32)

    # conv weights in PyTorch OIHW layout
    w1 = jax.random.normal(ks[1], (C, C, 3, 3), jnp.float32) * 0.1
    w2 = jax.random.normal(ks[2], (C, C, 3, 3), jnp.float32) * 0.1

    # BN params: (gamma, beta, running_mean, running_var)
    bn1 = (jax.random.uniform(ks[3], (C,), minval=0.5, maxval=1.5),
           jax.random.normal(ks[4], (C,)) * 0.1,
           jax.random.normal(ks[5], (C,)) * 0.1,
           jax.random.uniform(ks[6], (C,), minval=0.5, maxval=1.5))
    bn2 = (jax.random.uniform(ks[7], (C,), minval=0.5, maxval=1.5),
           jax.random.normal(ks[8], (C,)) * 0.1,
           jax.random.normal(ks[9], (C,)) * 0.1,
           jnp.ones((C,), jnp.float32))

    out = residual_block_forward(x, w1, bn1, w2, bn2)
    out = jax.block_until_ready(out)

    ref = _reference_forward(x, w1, bn1, w2, bn2)
    # bf16 activations (in/out) + bf16 MXU operands vs f32 reference.
    if not bool(jnp.allclose(out, ref, atol=1e-1, rtol=5e-2)):
        err = float(jnp.max(jnp.abs(out - ref)))
        raise AssertionError(f"Pallas ResidualBlock mismatch vs JAX reference (max abs err {err})")

    print("KERNEL_OK")
</pallas_src>

<mosaic_0001>
module attributes {stable_mosaic.version = 11 : i64} {
  func.func @_resblock_kernel(%arg0: i32, %arg1: memref<8x16x128xbf16, #tpu.memory_space<vmem>>, %arg2: memref<384x128xbf16, #tpu.memory_space<vmem>>, %arg3: memref<1x128xf32, #tpu.memory_space<vmem>>, %arg4: memref<384x128xbf16, #tpu.memory_space<vmem>>, %arg5: memref<1x128xf32, #tpu.memory_space<vmem>>, %arg6: memref<8x16x128xbf16, #tpu.memory_space<vmem>>) attributes {dimension_semantics = [#tpu.dimension_semantics<parallel>], iteration_bounds = array<i64: 1>, scalar_prefetch = 0 : i64, scratch_operands = 0 : i64, tpu.core_type = #tpu.core_type<tc>, window_params = [{transform_indices = @transform_0, window_bounds = array<i64: 8, 16, 128>}, {pipeline_mode = #tpu.pipeline_mode<synchronous>, transform_indices = @transform_1, window_bounds = array<i64: 384, 128>}, {pipeline_mode = #tpu.pipeline_mode<synchronous>, transform_indices = @transform_2, window_bounds = array<i64: 1, 128>}, {pipeline_mode = #tpu.pipeline_mode<synchronous>, transform_indices = @transform_3, window_bounds = array<i64: 384, 128>}, {pipeline_mode = #tpu.pipeline_mode<synchronous>, transform_indices = @transform_4, window_bounds = array<i64: 1, 128>}, {transform_indices = @transform_5, window_bounds = array<i64: 8, 16, 128>}]} {
    %0 = tpu.iota {dimensions = array<i32: 0>} : vector<128x1xi32>
    %c16_i32 = arith.constant 16 : i32
    %c0_i32 = arith.constant 0 : i32
    %1 = arith.cmpi eq, %c16_i32, %c0_i32 : i32
    %c1_i32 = arith.constant 1 : i32
    %2 = arith.select %1, %c1_i32, %c16_i32 : i32
    %3 = vector.broadcast %2 : i32 to vector<128x1xi32>
    %4 = arith.remsi %0, %3 : vector<128x1xi32>
    %c0_i32_0 = arith.constant 0 : i32
    %5 = vector.broadcast %c0_i32_0 : i32 to vector<128x1xi32>
    %6 = arith.cmpi ne, %4, %5 : vector<128x1xi32>
    %c0_i32_1 = arith.constant 0 : i32
    %7 = vector.broadcast %c0_i32_1 : i32 to vector<128x1xi32>
    %8 = arith.cmpi slt, %4, %7 : vector<128x1xi32>
    %c0_i32_2 = arith.constant 0 : i32
    %9 = arith.cmpi slt, %2, %c0_i32_2 : i32
    %10 = vector.broadcast %9 : i1 to vector<128x1xi1>
    %11 = vector.broadcast %10 : vector<128x1xi1> to vector<128x1xi1>
    %12 = arith.xori %8, %11 : vector<128x1xi1>
    %13 = arith.andi %12, %6 : vector<128x1xi1>
    %14 = vector.broadcast %2 : i32 to vector<128x1xi32>
    %15 = arith.addi %4, %14 : vector<128x1xi32>
    %16 = arith.select %13, %15, %4 : vector<128x1xi1>, vector<128x1xi32>
    %c0_i32_3 = arith.constant 0 : i32
    %17 = vector.broadcast %c0_i32_3 : i32 to vector<128x1xi32>
    %18 = arith.cmpi ne, %16, %17 : vector<128x1xi32>
    %c16_i32_4 = arith.constant 16 : i32
    %c0_i32_5 = arith.constant 0 : i32
    %19 = arith.cmpi eq, %c16_i32_4, %c0_i32_5 : i32
    %c1_i32_6 = arith.constant 1 : i32
    %20 = arith.select %19, %c1_i32_6, %c16_i32_4 : i32
    %21 = vector.broadcast %20 : i32 to vector<128x1xi32>
    %22 = arith.remsi %0, %21 : vector<128x1xi32>
    %c0_i32_7 = arith.constant 0 : i32
    %23 = vector.broadcast %c0_i32_7 : i32 to vector<128x1xi32>
    %24 = arith.cmpi ne, %22, %23 : vector<128x1xi32>
    %c0_i32_8 = arith.constant 0 : i32
    %25 = vector.broadcast %c0_i32_8 : i32 to vector<128x1xi32>
    %26 = arith.cmpi slt, %22, %25 : vector<128x1xi32>
    %c0_i32_9 = arith.constant 0 : i32
    %27 = arith.cmpi slt, %20, %c0_i32_9 : i32
    %28 = vector.broadcast %27 : i1 to vector<128x1xi1>
    %29 = vector.broadcast %28 : vector<128x1xi1> to vector<128x1xi1>
    %30 = arith.xori %26, %29 : vector<128x1xi1>
    %31 = arith.andi %30, %24 : vector<128x1xi1>
    %32 = vector.broadcast %20 : i32 to vector<128x1xi32>
    %33 = arith.addi %22, %32 : vector<128x1xi32>
    %34 = arith.select %31, %33, %22 : vector<128x1xi1>, vector<128x1xi32>
    %c15_i32 = arith.constant 15 : i32
    %35 = vector.broadcast %c15_i32 : i32 to vector<128x1xi32>
    %36 = arith.cmpi ne, %34, %35 : vector<128x1xi32>
    %c0 = arith.constant 0 : index
    %c0_10 = arith.constant 0 : index
    %c0_11 = arith.constant 0 : index
    %37 = vector.load %arg1[%c0, %c0_10, %c0_11] : memref<8x16x128xbf16, #tpu.memory_space<vmem>>, vector<8x16x128xbf16>
    %38 = vector.shape_cast %37 : vector<8x16x128xbf16> to vector<128x128xbf16>
    %39 = arith.extf %38 : vector<128x128xbf16> to vector<128x128xf32>
    %c1_i32_12 = arith.constant 1 : i32
    %40 = tpu.dynamic_rotate %39 by %c1_i32_12 dim 0 : vector<128x128xf32>, i32 -> vector<128x128xf32>
    %cst = arith.constant 0.000000e+00 : f32
    %41 = vector.shape_cast %18 : vector<128x1xi1> to vector<128x1xi1>
    %42 = vector.broadcast %41 : vector<128x1xi1> to vector<128x128xi1>
    %43 = vector.broadcast %cst : f32 to vector<128x128xf32>
    %44 = arith.select %42, %40, %43 : vector<128x128xi1>, vector<128x128xf32>
    %c127_i32 = arith.constant 127 : i32
    %45 = tpu.dynamic_rotate %39 by %c127_i32 dim 0 : vector<128x128xf32>, i32 -> vector<128x128xf32>
    %cst_13 = arith.constant 0.000000e+00 : f32
    %46 = vector.shape_cast %36 : vector<128x1xi1> to vector<128x1xi1>
    %47 = vector.broadcast %46 : vector<128x1xi1> to vector<128x128xi1>
    %48 = vector.broadcast %cst_13 : f32 to vector<128x128xf32>
    %49 = arith.select %47, %45, %48 : vector<128x128xi1>, vector<128x128xf32>
    %50 = tpu.concatenate %44, %39, %49 in 1 : vector<128x128xf32>, vector<128x128xf32>, vector<128x128xf32> -> vector<128x384xf32>
    %51 = arith.truncf %50 : vector<128x384xf32> to vector<128x384xbf16>
    %c0_14 = arith.constant 0 : index
    %c0_15 = arith.constant 0 : index
    %52 = vector.load %arg2[%c0_14, %c0_15] : memref<384x128xbf16, #tpu.memory_space<vmem>>, vector<384x128xbf16>
    %cst_16 = arith.constant dense<0.000000e+00> : vector<128x128xf32>
    %53 = tpu.matmul %51, %52, %cst_16 {dimension_numbers = #tpu.dot_dimension_numbers<[1], [0], [0], [1], [0, 0, 1, 1], [], []>} : vector<128x384xbf16>, vector<384x128xbf16>, vector<128x128xf32> -> vector<128x128xf32>
    %c0_17 = arith.constant 0 : index
    %c0_18 = arith.constant 0 : index
    %54 = vector.load %arg3[%c0_17, %c0_18] : memref<1x128xf32, #tpu.memory_space<vmem>>, vector<1x128xf32>
    %55 = vector.broadcast %54 : vector<1x128xf32> to vector<128x128xf32>
    %56 = arith.addf %53, %55 : vector<128x128xf32>
    %cst_19 = arith.constant 0.000000e+00 : f32
    %57 = vector.broadcast %cst_19 : f32 to vector<128x128xf32>
    %58 = arith.maximumf %56, %57 : vector<128x128xf32>
    %c0_20 = arith.constant 0 : index
    %c0_21 = arith.constant 0 : index
    %c0_22 = arith.constant 0 : index
    %59 = vector.load %arg1[%c0_20, %c0_21, %c0_22] : memref<8x16x128xbf16, #tpu.memory_space<vmem>>, vector<8x16x128xbf16>
    %60 = vector.shape_cast %59 : vector<8x16x128xbf16> to vector<128x128xbf16>
    %61 = arith.extf %60 : vector<128x128xbf16> to vector<128x128xf32>
    %c1_i32_23 = arith.constant 1 : i32
    %62 = tpu.dynamic_rotate %58 by %c1_i32_23 dim 0 : vector<128x128xf32>, i32 -> vector<128x128xf32>
    %cst_24 = arith.constant 0.000000e+00 : f32
    %63 = vector.shape_cast %18 : vector<128x1xi1> to vector<128x1xi1>
    %64 = vector.broadcast %63 : vector<128x1xi1> to vector<128x128xi1>
    %65 = vector.broadcast %cst_24 : f32 to vector<128x128xf32>
    %66 = arith.select %64, %62, %65 : vector<128x128xi1>, vector<128x128xf32>
    %c127_i32_25 = arith.constant 127 : i32
    %67 = tpu.dynamic_rotate %58 by %c127_i32_25 dim 0 : vector<128x128xf32>, i32 -> vector<128x128xf32>
    %cst_26 = arith.constant 0.000000e+00 : f32
    %68 = vector.shape_cast %36 : vector<128x1xi1> to vector<128x1xi1>
    %69 = vector.broadcast %68 : vector<128x1xi1> to vector<128x128xi1>
    %70 = vector.broadcast %cst_26 : f32 to vector<128x128xf32>
    %71 = arith.select %69, %67, %70 : vector<128x128xi1>, vector<128x128xf32>
    %72 = tpu.concatenate %66, %58, %71 in 1 : vector<128x128xf32>, vector<128x128xf32>, vector<128x128xf32> -> vector<128x384xf32>
    %73 = arith.truncf %72 : vector<128x384xf32> to vector<128x384xbf16>
    %c0_27 = arith.constant 0 : index
    %c0_28 = arith.constant 0 : index
    %74 = vector.load %arg4[%c0_27, %c0_28] : memref<384x128xbf16, #tpu.memory_space<vmem>>, vector<384x128xbf16>
    %cst_29 = arith.constant dense<0.000000e+00> : vector<128x128xf32>
    %75 = tpu.matmul %73, %74, %cst_29 {dimension_numbers = #tpu.dot_dimension_numbers<[1], [0], [0], [1], [0, 0, 1, 1], [], []>} : vector<128x384xbf16>, vector<384x128xbf16>, vector<128x128xf32> -> vector<128x128xf32>
    %c0_30 = arith.constant 0 : index
    %c0_31 = arith.constant 0 : index
    %76 = vector.load %arg5[%c0_30, %c0_31] : memref<1x128xf32, #tpu.memory_space<vmem>>, vector<1x128xf32>
    %77 = vector.broadcast %76 : vector<1x128xf32> to vector<128x128xf32>
    %78 = arith.addf %75, %77 : vector<128x128xf32>
    %79 = arith.addf %78, %61 : vector<128x128xf32>
    %cst_32 = arith.constant 0.000000e+00 : f32
    %80 = vector.broadcast %cst_32 : f32 to vector<128x128xf32>
    %81 = arith.maximumf %79, %80 : vector<128x128xf32>
    %82 = vector.shape_cast %81 : vector<128x128xf32> to vector<8x16x128xf32>
    %83 = arith.truncf %82 : vector<8x16x128xf32> to vector<8x16x128xbf16>
    %c0_33 = arith.constant 0 : index
    %c0_34 = arith.constant 0 : index
    %c0_35 = arith.constant 0 : index
    %84 = vector.load %arg6[%c0_33, %c0_34, %c0_35] : memref<8x16x128xbf16, #tpu.memory_space<vmem>>, vector<8x16x128xbf16>
    tpu.vector_store %arg6[%c0_33, %c0_34, %c0_35], %83 {strides = array<i32>} : memref<8x16x128xbf16, #tpu.memory_space<vmem>>, vector<8x16x128xbf16>,
    return
  }
  func.func @transform_0(%arg0: i32) -> (i32, i32, i32) {
    %c0_i32 = arith.constant 0 : i32
    %c0_i32_0 = arith.constant 0 : i32
    %c0_i32_1 = arith.constant 0 : i32
    return %arg0, %c0_i32, %c0_i32_0 : i32, i32, i32
  }
  func.func @transform_1(%arg0: i32) -> (i32, i32) {
    %c0_i32 = arith.constant 0 : i32
    %c0_i32_0 = arith.constant 0 : i32
    %c0_i32_1 = arith.constant 0 : i32
    return %c0_i32, %c0_i32_0 : i32, i32
  }
  func.func @transform_2(%arg0: i32) -> (i32, i32) {
    %c0_i32 = arith.constant 0 : i32
    %c0_i32_0 = arith.constant 0 : i32
    %c0_i32_1 = arith.constant 0 : i32
    return %c0_i32, %c0_i32_0 : i32, i32
  }
  func.func @transform_3(%arg0: i32) -> (i32, i32) {
    %c0_i32 = arith.constant 0 : i32
    %c0_i32_0 = arith.constant 0 : i32
    %c0_i32_1 = arith.constant 0 : i32
    return %c0_i32, %c0_i32_0 : i32, i32
  }
  func.func @transform_4(%arg0: i32) -> (i32, i32) {
    %c0_i32 = arith.constant 0 : i32
    %c0_i32_0 = arith.constant 0 : i32
    %c0_i32_1 = arith.constant 0 : i32
    return %c0_i32, %c0_i32_0 : i32, i32
  }
  func.func @transform_5(%arg0: i32) -> (i32, i32, i32) {
    %c0_i32 = arith.constant 0 : i32
    %c0_i32_0 = arith.constant 0 : i32
    %c0_i32_1 = arith.constant 0 : i32
    return %arg0, %c0_i32, %c0_i32_0 : i32, i32, i32
  }
}

</mosaic_0001>

<llo_original>
// kernel: tpu_custom_call.1
$region0: #{tpu_custom_call.1}
  #allocation0 [shape = 'u32[]', space=smem, size = 0x4, offset = 0x4, fixed_abs, tag = 'smem constant byte address 0x4 - core index']
  #allocation1 [shape = 'u32[144,128]{1,0:T(1,128)}', space=vmem, size = 0x12000, scoped, tag = 'internal scratch']
  %s0 = inlined_call_operand.hbm [shape: bf16[8,16,128], index: 0, kind: input, shape index: {}]
  %s1 = inlined_call_operand.hbm [shape: bf16[384,128], index: 1, kind: input, shape index: {}]
  %s2 = inlined_call_operand.hbm [shape: f32[1,128], index: 2, kind: input, shape index: {}]
  %s3 = inlined_call_operand.hbm [shape: bf16[384,128], index: 3, kind: input, shape index: {}]
  %s4 = inlined_call_operand.hbm [shape: f32[1,128], index: 4, kind: input, shape index: {}]
  %s5 = inlined_call_operand.hbm [shape: bf16[8,16,128], index: 5, kind: output, shape index: {}]
  %s6 = sld [smem:[#allocation0]]
  $region50: #{tpu_custom_call.1} parent=0
    _
  %s8 = ssub.s32 1, %s6
  %s9 = scalar_select 0, %s8, %s6
  $region1: #{tpu_custom_call.1} parent=0
    #allocation2 [shape = 'u8[32768]{0}', space=vmem, size = 0x8000, scoped, tag = 'input window, operand 0, single buffered']
    #allocation3 [shape = 's32[1]{0}', space=sflag, size = 0x4, scoped, tag = 'scoped memory for tpu_custom_call.1']
    #allocation4 [shape = 's32[1]{0}', space=sflag, size = 0x4, scoped, tag = 'scoped memory for tpu_custom_call.1']
    #allocation5 [shape = 'u8[98304]{0}', space=vmem, size = 0x18000, scoped, tag = 'input window, operand 1, single buffered']
    #allocation6 [shape = 's32[1]{0}', space=sflag, size = 0x4, scoped, tag = 'scoped memory for tpu_custom_call.1']
    #allocation7 [shape = 'u8[512]{0}', space=vmem, size = 0x400, scoped, tag = 'input window, operand 2, single buffered']
    #allocation8 [shape = 'u8[98304]{0}', space=vmem, size = 0x18000, scoped, tag = 'input window, operand 3, single buffered']
    #allocation9 [shape = 's32[1]{0}', space=sflag, size = 0x4, scoped, tag = 'scoped memory for tpu_custom_call.1']
    #allocation10 [shape = 'u8[512]{0}', space=vmem, size = 0x400, scoped, tag = 'input window, operand 4, single buffered']
    #allocation11 [shape = 'u8[32768]{0}', space=vmem, size = 0x8000, scoped, tag = 'output window, operand 0, single buffered']
    %10 = vsyncpa [#allocation3], 0
    %11 = vsyncpa [#allocation6], 0
    %12 = vsyncpa [#allocation9], 0
    %13 = vsyncpa [#allocation4], 0
    // Predicated region
    $region2: #{tpu_custom_call.1} parent=1 // pred_check
      _
    $region3: #{tpu_custom_call.1} parent=1 // pred_check_branch
      %15 = sbr.rel (0) target = $region5
    $region4: #{tpu_custom_call.1} parent=1 // pred_region
      %s17 = ssub.s32 1024, 1024
      %18 = vsyncadd [#allocation3], %s17
      %s19 = sshll.u32 [#allocation2], 4
      %s20 = int_to_ptr.vmem [resolvable:$true] %s19
      %25 = dma.hbm_to_vmem [thread:$0]  %s0, 1024, %s20, [#allocation3], 64, 64, 4
    $region5: #{tpu_custom_call.1} parent=1 // pred_fallthru
      _
    // Predicated region
    $region6: #{tpu_custom_call.1} parent=1 // pred_check
      _
    $region7: #{tpu_custom_call.1} parent=1 // pred_check_branch
      %27 = sbr.rel (0) target = $region9
    $region8: #{tpu_custom_call.1} parent=1 // pred_region
      %s29 = ssub.s32 3072, 3072
      %30 = vsyncadd [#allocation6], %s29
      %s31 = sshll.u32 [#allocation5], 4
      %s32 = int_to_ptr.vmem [resolvable:$true] %s31
      %37 = dma.hbm_to_vmem [thread:$0]  %s1, 3072, %s32, [#allocation6], 64, 64, 4
    $region9: #{tpu_custom_call.1} parent=1 // pred_fallthru
      _
    // Predicated region
    $region10: #{tpu_custom_call.1} parent=1 // pred_check
      _
    $region11: #{tpu_custom_call.1} parent=1 // pred_check_branch
      %39 = sbr.rel (0) target = $region13
    $region12: #{tpu_custom_call.1} parent=1 // pred_region
      %s41 = ssub.s32 16, 16
      %42 = vsyncadd [#allocation6], %s41
      %s44 = sshll.u32 [#allocation7], 4
      %s45 = int_to_ptr.vmem [resolvable:$true] %s44
      %47 = dma.hbm_to_vmem [thread:$0]  %s2, 16, %s45, [#allocation6]
    $region13: #{tpu_custom_call.1} parent=1 // pred_fallthru
      _
    // Predicated region
    $region14: #{tpu_custom_call.1} parent=1 // pred_check
      _
    $region15: #{tpu_custom_call.1} parent=1 // pred_check_branch
      %49 = sbr.rel (0) target = $region17
    $region16: #{tpu_custom_call.1} parent=1 // pred_region
      %s51 = ssub.s32 3072, 3072
      %52 = vsyncadd [#allocation9], %s51
      %s53 = sshll.u32 [#allocation8], 4
      %s54 = int_to_ptr.vmem [resolvable:$true] %s53
      %59 = dma.hbm_to_vmem [thread:$0]  %s3, 3072, %s54, [#allocation9], 64, 64, 4
    $region17: #{tpu_custom_call.1} parent=1 // pred_fallthru
      _
    // Predicated region
    $region18: #{tpu_custom_call.1} parent=1 // pred_check
      _
    $region19: #{tpu_custom_call.1} parent=1 // pred_check_branch
      %61 = sbr.rel (0) target = $region21
    $region20: #{tpu_custom_call.1} parent=1 // pred_region
      %s63 = ssub.s32 16, 16
      %64 = vsyncadd [#allocation9], %s63
      %s66 = sshll.u32 [#allocation10], 4
      %s67 = int_to_ptr.vmem [resolvable:$true] %s66
      %69 = dma.hbm_to_vmem [thread:$0]  %s4, 16, %s67, [#allocation9]
    $region21: #{tpu_custom_call.1} parent=1 // pred_fallthru
      _
    // Predicated region
    $region22: #{tpu_custom_call.1} parent=1 // pred_check
      _
    $region23: #{tpu_custom_call.1} parent=1 // pred_check_branch
      %71 = sbr.rel (0) target = $region25
    $region24: #{tpu_custom_call.1} parent=1 // pred_region
      %72 = dma.done [#allocation3], 1024
    $region25: #{tpu_custom_call.1} parent=1 // pred_fallthru
      _
    // Predicated region
    $region26: #{tpu_custom_call.1} parent=1 // pred_check
      _
    $region27: #{tpu_custom_call.1} parent=1 // pred_check_branch
      %74 = sbr.rel (0) target = $region29
    $region28: #{tpu_custom_call.1} parent=1 // pred_region
      %75 = dma.done [#allocation6], 3072
    $region29: #{tpu_custom_call.1} parent=1 // pred_fallthru
      _
    // Predicated region
    $region30: #{tpu_custom_call.1} parent=1 // pred_check
      _
    $region31: #{tpu_custom_call.1} parent=1 // pred_check_branch
      %77 = sbr.rel (0) target = $region33
    $region32: #{tpu_custom_call.1} parent=1 // pred_region
      %78 = dma.done [#allocation6], 16
    $region33: #{tpu_custom_call.1} parent=1 // pred_fallthru
      _
    // Predicated region
    $region34: #{tpu_custom_call.1} parent=1 // pred_check
      _
    $region35: #{tpu_custom_call.1} parent=1 // pred_check_branch
      %80 = sbr.rel (0) target = $region37
    $region36: #{tpu_custom_call.1} parent=1 // pred_region
      %81 = dma.done [#allocation9], 3072
    $region37: #{tpu_custom_call.1} parent=1 // pred_fallthru
      _
    // Predicated region
    $region38: #{tpu_custom_call.1} parent=1 // pred_check
      _
    $region39: #{tpu_custom_call.1} parent=1 // pred_check_branch
      %83 = sbr.rel (0) target = $region41
    $region40: #{tpu_custom_call.1} parent=1 // pred_region
      %84 = dma.done [#allocation9], 16
    $region41: #{tpu_custom_call.1} parent=1 // pred_fallthru
      _
    %v86 = vlaneseq
    %v87 = vshrl.u32 %v86, 7
    %v88 = vadd.s32 %v87, 8
    %v89 = vadd.s32 %v87, 16
    %v90 = vadd.s32 %v87, 24
    %v91 = vadd.s32 %v87, 32
    %v92 = vadd.s32 %v87, 40
    %v93 = vadd.s32 %v87, 48
    %v94 = vadd.s32 %v87, 56
    %v95 = vadd.s32 %v87, 64
    %v96 = vadd.s32 %v87, 72
    %v97 = vadd.s32 %v87, 80
    %v98 = vadd.s32 %v87, 88
    %v99 = vadd.s32 %v87, 96
    %v100 = vadd.s32 %v87, 104
    %v101 = vadd.s32 %v87, 112
    %v102 = vadd.s32 %v87, 120
    %vm103 = vcmp.lt.s32.totalorder %v87, 0
    %v104 = vsub.s32 0, %v87
    %v105 = vsel %vm103, %v104, %v87
    %v106 = vshrl.u32 %v105, 4
    %v107 = vand.u32 %v105, 15
    %v108 = vsub.s32 0, %v107
    %v109 = vsel %vm103, %v108, %v107
    %vm110 = vcmp.lt.s32.totalorder %v88, 0
    %v111 = vsub.s32 0, %v88
    %v112 = vsel %vm110, %v111, %v88
    %v113 = vshrl.u32 %v112, 4
    %v114 = vand.u32 %v112, 15
    %v115 = vsub.s32 0, %v114
    %v116 = vsel %vm110, %v115, %v114
    %vm117 = vcmp.lt.s32.totalorder %v89, 0
    %v118 = vsub.s32 0, %v89
    %v119 = vsel %vm117, %v118, %v89
    %v120 = vshrl.u32 %v119, 4
    %v121 = vand.u32 %v119, 15
    %v122 = vsub.s32 0, %v121
    %v123 = vsel %vm117, %v122, %v121
    %vm124 = vcmp.lt.s32.totalorder %v90, 0
    %v125 = vsub.s32 0, %v90
    %v126 = vsel %vm124, %v125, %v90
    %v127 = vshrl.u32 %v126, 4
    %v128 = vand.u32 %v126, 15
    %v129 = vsub.s32 0, %v128
    %v130 = vsel %vm124, %v129, %v128
    %vm131 = vcmp.lt.s32.totalorder %v91, 0
    %v132 = vsub.s32 0, %v91
    %v133 = vsel %vm131, %v132, %v91
    %v134 = vshrl.u32 %v133, 4
    %v135 = vand.u32 %v133, 15
    %v136 = vsub.s32 0, %v135
    %v137 = vsel %vm131, %v136, %v135
    %vm138 = vcmp.lt.s32.totalorder %v92, 0
    %v139 = vsub.s32 0, %v92
    %v140 = vsel %vm138, %v139, %v92
    %v141 = vshrl.u32 %v140, 4
    %v142 = vand.u32 %v140, 15
    %v143 = vsub.s32 0, %v142
    %v144 = vsel %vm138, %v143, %v142
    %vm145 = vcmp.lt.s32.totalorder %v93, 0
    %v146 = vsub.s32 0, %v93
    %v147 = vsel %vm145, %v146, %v93
    %v148 = vshrl.u32 %v147, 4
    %v149 = vand.u32 %v147, 15
    %v150 = vsub.s32 0, %v149
    %v151 = vsel %vm145, %v150, %v149
    %vm152 = vcmp.lt.s32.totalorder %v94, 0
    %v153 = vsub.s32 0, %v94
    %v154 = vsel %vm152, %v153, %v94
    %v155 = vshrl.u32 %v154, 4
    %v156 = vand.u32 %v154, 15
    %v157 = vsub.s32 0, %v156
    %v158 = vsel %vm152, %v157, %v156
    %vm159 = vcmp.lt.s32.totalorder %v95, 0
    %v160 = vsub.s32 0, %v95
    %v161 = vsel %vm159, %v160, %v95
    %v162 = vshrl.u32 %v161, 4
    %v163 = vand.u32 %v161, 15
    %v164 = vsub.s32 0, %v163
    %v165 = vsel %vm159, %v164, %v163
    %vm166 = vcmp.lt.s32.totalorder %v96, 0
    %v167 = vsub.s32 0, %v96
    %v168 = vsel %vm166, %v167, %v96
    %v169 = vshrl.u32 %v168, 4
    %v170 = vand.u32 %v168, 15
    %v171 = vsub.s32 0, %v170
    %v172 = vsel %vm166, %v171, %v170
    %vm173 = vcmp.lt.s32.totalorder %v97, 0
    %v174 = vsub.s32 0, %v97
    %v175 = vsel %vm173, %v174, %v97
    %v176 = vshrl.u32 %v175, 4
    %v177 = vand.u32 %v175, 15
    %v178 = vsub.s32 0, %v177
    %v179 = vsel %vm173, %v178, %v177
    %vm180 = vcmp.lt.s32.totalorder %v98, 0
    %v181 = vsub.s32 0, %v98
    %v182 = vsel %vm180, %v181, %v98
    %v183 = vshrl.u32 %v182, 4
    %v184 = vand.u32 %v182, 15
    %v185 = vsub.s32 0, %v184
    %v186 = vsel %vm180, %v185, %v184
    %vm187 = vcmp.lt.s32.totalorder %v99, 0
    %v188 = vsub.s32 0, %v99
    %v189 = vsel %vm187, %v188, %v99
    %v190 = vshrl.u32 %v189, 4
    %v191 = vand.u32 %v189, 15
    %v192 = vsub.s32 0, %v191
    %v193 = vsel %vm187, %v192, %v191
    %vm194 = vcmp.lt.s32.totalorder %v100, 0
    %v195 = vsub.s32 0, %v100
    %v196 = vsel %vm194, %v195, %v100
    %v197 = vshrl.u32 %v196, 4
    %v198 = vand.u32 %v196, 15
    %v199 = vsub.s32 0, %v198
    %v200 = vsel %vm194, %v199, %v198
    %vm201 = vcmp.lt.s32.totalorder %v101, 0
    %v202 = vsub.s32 0, %v101
    %v203 = vsel %vm201, %v202, %v101
    %v204 = vshrl.u32 %v203, 4
    %v205 = vand.u32 %v203, 15
    %v206 = vsub.s32 0, %v205
    %v207 = vsel %vm201, %v206, %v205
    %vm208 = vcmp.lt.s32.totalorder %v102, 0
    %v209 = vsub.s32 0, %v102
    %v210 = vsel %vm208, %v209, %v102
    %v211 = vshrl.u32 %v210, 4
    %v212 = vand.u32 %v210, 15
    %v213 = vsub.s32 0, %v212
    %v214 = vsel %vm208, %v213, %v212
    %vm215 = vcmp.ne.s32.totalorder %v109, 0
    %vm216 = vcmp.ne.s32.totalorder %v116, 0
    %vm217 = vcmp.ne.s32.totalorder %v123, 0
    %vm218 = vcmp.ne.s32.totalorder %v130, 0
    %vm219 = vcmp.ne.s32.totalorder %v137, 0
    %vm220 = vcmp.ne.s32.totalorder %v144, 0
    %vm221 = vcmp.ne.s32.totalorder %v151, 0
    %vm222 = vcmp.ne.s32.totalorder %v158, 0
    %vm223 = vcmp.ne.s32.totalorder %v165, 0
    %vm224 = vcmp.ne.s32.totalorder %v172, 0
    %vm225 = vcmp.ne.s32.totalorder %v179, 0
    %vm226 = vcmp.ne.s32.totalorder %v186, 0
    %vm227 = vcmp.ne.s32.totalorder %v193, 0
    %vm228 = vcmp.ne.s32.totalorder %v200, 0
    %vm229 = vcmp.ne.s32.totalorder %v207, 0
    %vm230 = vcmp.ne.s32.totalorder %v214, 0
    %vm231 = vcmp.lt.s32.totalorder %v109, 0
    %vm232 = vcmp.lt.s32.totalorder %v116, 0
    %vm233 = vcmp.lt.s32.totalorder %v123, 0
    %vm234 = vcmp.lt.s32.totalorder %v130, 0
    %vm235 = vcmp.lt.s32.totalorder %v137, 0
    %vm236 = vcmp.lt.s32.totalorder %v144, 0
    %vm237 = vcmp.lt.s32.totalorder %v151, 0
    %vm238 = vcmp.lt.s32.totalorder %v158, 0
    %vm239 = vcmp.lt.s32.totalorder %v165, 0
    %vm240 = vcmp.lt.s32.totalorder %v172, 0
    %vm241 = vcmp.lt.s32.totalorder %v179, 0
    %vm242 = vcmp.lt.s32.totalorder %v186, 0
    %vm243 = vcmp.lt.s32.totalorder %v193, 0
    %vm244 = vcmp.lt.s32.totalorder %v200, 0
    %vm245 = vcmp.lt.s32.totalorder %v207, 0
    %vm246 = vcmp.lt.s32.totalorder %v214, 0
    %vm247 = vmand %vm231, %vm215
    %vm248 = vmand %vm232, %vm216
    %vm249 = vmand %vm233, %vm217
    %vm250 = vmand %vm234, %vm218
    %vm251 = vmand %vm235, %vm219
    %vm252 = vmand %vm236, %vm220
    %vm253 = vmand %vm237, %vm221
    %vm254 = vmand %vm238, %vm222
    %vm255 = vmand %vm239, %vm223
    %vm256 = vmand %vm240, %vm224
    %vm257 = vmand %vm241, %vm225
    %vm258 = vmand %vm242, %vm226
    %vm259 = vmand %vm243, %vm227
    %vm260 = vmand %vm244, %vm228
    %vm261 = vmand %vm245, %vm229
    %vm262 = vmand %vm246, %vm230
    %v263 = vadd.s32 %v109, 16
    %v264 = vadd.s32 %v116, 16
    %v265 = vadd.s32 %v123, 16
    %v266 = vadd.s32 %v130, 16
    %v267 = vadd.s32 %v137, 16
    %v268 = vadd.s32 %v144, 16
    %v269 = vadd.s32 %v151, 16
    %v270 = vadd.s32 %v158, 16
    %v271 = vadd.s32 %v165, 16
    %v272 = vadd.s32 %v172, 16
    %v273 = vadd.s32 %v179, 16
    %v274 = vadd.s32 %v186, 16
    %v275 = vadd.s32 %v193, 16
    %v276 = vadd.s32 %v200, 16
    %v277 = vadd.s32 %v207, 16
    %v278 = vadd.s32 %v214, 16
    %v279 = vsel %vm247, %v263, %v109
    %v280 = vsel %vm248, %v264, %v116
    %v281 = vsel %vm249, %v265, %v123
    %v282 = vsel %vm250, %v266, %v130
    %v283 = vsel %vm251, %v267, %v137
    %v284 = vsel %vm252, %v268, %v144
    %v285 = vsel %vm253, %v269, %v151
    %v286 = vsel %vm254, %v270, %v158
    %v287 = vsel %vm255, %v271, %v165
    %v288 = vsel %vm256, %v272, %v172
    %v289 = vsel %vm257, %v273, %v179
    %v290 = vsel %vm258, %v274, %v186
    %v291 = vsel %vm259, %v275, %v193
    %v292 = vsel %vm260, %v276, %v200
    %v293 = vsel %vm261, %v277, %v207
    %v294 = vsel %vm262, %v278, %v214
    %vm295 = vcmp.ne.s32.totalorder %v279, 0
    %vm296 = vcmp.ne.s32.totalorder %v280, 0
    %vm297 = vcmp.ne.s32.totalorder %v281, 0
    %vm298 = vcmp.ne.s32.totalorder %v282, 0
    %vm299 = vcmp.ne.s32.totalorder %v283, 0
    %vm300 = vcmp.ne.s32.totalorder %v284, 0
    %vm301 = vcmp.ne.s32.totalorder %v285, 0
    %vm302 = vcmp.ne.s32.totalorder %v286, 0
    %vm303 = vcmp.ne.s32.totalorder %v287, 0
    %vm304 = vcmp.ne.s32.totalorder %v288, 0
    %vm305 = vcmp.ne.s32.totalorder %v289, 0
    %vm306 = vcmp.ne.s32.totalorder %v290, 0
    %vm307 = vcmp.ne.s32.totalorder %v291, 0
    %vm308 = vcmp.ne.s32.totalorder %v292, 0
    %vm309 = vcmp.ne.s32.totalorder %v293, 0
    %vm310 = vcmp.ne.s32.totalorder %v294, 0
    %vm311 = vcmp.ne.s32.totalorder %v279, 15
    %vm312 = vcmp.ne.s32.totalorder %v280, 15
    %vm313 = vcmp.ne.s32.totalorder %v281, 15
    %vm314 = vcmp.ne.s32.totalorder %v282, 15
    %vm315 = vcmp.ne.s32.totalorder %v283, 15
    %vm316 = vcmp.ne.s32.totalorder %v284, 15
    %vm317 = vcmp.ne.s32.totalorder %v285, 15
    %vm318 = vcmp.ne.s32.totalorder %v286, 15
    %vm319 = vcmp.ne.s32.totalorder %v287, 15
    %vm320 = vcmp.ne.s32.totalorder %v288, 15
    %vm321 = vcmp.ne.s32.totalorder %v289, 15
    %vm322 = vcmp.ne.s32.totalorder %v290, 15
    %vm323 = vcmp.ne.s32.totalorder %v291, 15
    %vm324 = vcmp.ne.s32.totalorder %v292, 15
    %vm325 = vcmp.ne.s32.totalorder %v293, 15
    %vm326 = vcmp.ne.s32.totalorder %v294, 15
    %v327 = vld [vmem:[#allocation2] sm:$0xf]
    %v328 = vld [vmem:[#allocation2 + $0x4] sm:$0xf]
    %v329 = vld [vmem:[#allocation2 + $0x8] sm:$0xf]
    %v330 = vld [vmem:[#allocation2 + $0xc] sm:$0xf]
    %v331 = vld [vmem:[#allocation2 + $0x10] sm:$0xf]
    %v332 = vld [vmem:[#allocation2 + $0x14] sm:$0xf]
    %v333 = vld [vmem:[#allocation2 + $0x18] sm:$0xf]
    %v334 = vld [vmem:[#allocation2 + $0x1c] sm:$0xf]
    %v335 = vld [vmem:[#allocation2 + $0x20] sm:$0xf]
    %v336 = vld [vmem:[#allocation2 + $0x24] sm:$0xf]
    %v337 = vld [vmem:[#allocation2 + $0x28] sm:$0xf]
    %v338 = vld [vmem:[#allocation2 + $0x2c] sm:$0xf]
    %v339 = vld [vmem:[#allocation2 + $0x30] sm:$0xf]
    %v340 = vld [vmem:[#allocation2 + $0x34] sm:$0xf]
    %v341 = vld [vmem:[#allocation2 + $0x38] sm:$0xf]
    %v342 = vld [vmem:[#allocation2 + $0x3c] sm:$0xf]
    %v343 = vunpack.c.l.bf16 %v327
    %v344 = vunpack.c.l.bf16 %v328
    %v345 = vunpack.c.l.bf16 %v329
    %v346 = vunpack.c.l.bf16 %v330
    %v347 = vunpack.c.l.bf16 %v331
    %v348 = vunpack.c.l.bf16 %v332
    %v349 = vunpack.c.l.bf16 %v333
    %v350 = vunpack.c.l.bf16 %v334
    %v351 = vunpack.c.l.bf16 %v335
    %v352 = vunpack.c.l.bf16 %v336
    %v353 = vunpack.c.l.bf16 %v337
    %v354 = vunpack.c.l.bf16 %v338
    %v355 = vunpack.c.l.bf16 %v339
    %v356 = vunpack.c.l.bf16 %v340
    %v357 = vunpack.c.l.bf16 %v341
    %v358 = vunpack.c.l.bf16 %v342
    %v359 = vrot.slane %v343, 7
    %v360 = vrot.slane %v344, 7
    %v361 = vrot.slane %v345, 7
    %v362 = vrot.slane %v346, 7
    %v363 = vrot.slane %v347, 7
    %v364 = vrot.slane %v348, 7
    %v365 = vrot.slane %v349, 7
    %v366 = vrot.slane %v350, 7
    %v367 = vrot.slane %v351, 7
    %v368 = vrot.slane %v352, 7
    %v369 = vrot.slane %v353, 7
    %v370 = vrot.slane %v354, 7
    %v371 = vrot.slane %v355, 7
    %v372 = vrot.slane %v356, 7
    %v373 = vrot.slane %v357, 7
    %v374 = vrot.slane %v358, 7
    %vm375 = vcmp.lt.s32.totalorder %v87, 1
    %v376 = vsel %vm375, %v373, %v374
    %v377 = vsel %vm375, %v372, %v373
    %v378 = vsel %vm375, %v371, %v372
    %v379 = vsel %vm375, %v370, %v371
    %v380 = vsel %vm375, %v369, %v370
    %v381 = vsel %vm375, %v368, %v369
    %v382 = vsel %vm375, %v367, %v368
    %v383 = vsel %vm375, %v366, %v367
    %v384 = vsel %vm375, %v365, %v366
    %v385 = vsel %vm375, %v364, %v365
    %v386 = vsel %vm375, %v363, %v364
    %v387 = vsel %vm375, %v362, %v363
    %v388 = vsel %vm375, %v361, %v362
    %v389 = vsel %vm375, %v360, %v361
    %v390 = vsel %vm375, %v359, %v360
    %v391 = vsel %vm375, %v374, %v359
    %v392 = vsel %vm295, 1, 0
    %v393 = vsel %vm296, 1, 0
    %v394 = vsel %vm297, 1, 0
    %v395 = vsel %vm298, 1, 0
    %v396 = vsel %vm299, 1, 0
    %v397 = vsel %vm300, 1, 0
    %v398 = vsel %vm301, 1, 0
    %v399 = vsel %vm302, 1, 0
    %v400 = vsel %vm303, 1, 0
    %v401 = vsel %vm304, 1, 0
    %v402 = vsel %vm305, 1, 0
    %v403 = vsel %vm306, 1, 0
    %v404 = vsel %vm307, 1, 0
    %v405 = vsel %vm308, 1, 0
    %v406 = vsel %vm309, 1, 0
    %v407 = vsel %vm310, 1, 0
    %vm408 = vcmp.eq.s32.totalorder %v392, 1
    %vm409 = vcmp.eq.s32.totalorder %v393, 1
    %vm410 = vcmp.eq.s32.totalorder %v394, 1
    %vm411 = vcmp.eq.s32.totalorder %v395, 1
    %vm412 = vcmp.eq.s32.totalorder %v396, 1
    %vm413 = vcmp.eq.s32.totalorder %v397, 1
    %vm414 = vcmp.eq.s32.totalorder %v398, 1
    %vm415 = vcmp.eq.s32.totalorder %v399, 1
    %vm416 = vcmp.eq.s32.totalorder %v400, 1
    %vm417 = vcmp.eq.s32.totalorder %v401, 1
    %vm418 = vcmp.eq.s32.totalorder %v402, 1
    %vm419 = vcmp.eq.s32.totalorder %v403, 1
    %vm420 = vcmp.eq.s32.totalorder %v404, 1
    %vm421 = vcmp.eq.s32.totalorder %v405, 1
    %vm422 = vcmp.eq.s32.totalorder %v406, 1
    %vm423 = vcmp.eq.s32.totalorder %v407, 1
    %v424 = vsel %vm408, %v391, 0.0
    %v425 = vsel %vm409, %v390, 0.0
    %v426 = vsel %vm410, %v389, 0.0
    %v427 = vsel %vm411, %v388, 0.0
    %v428 = vsel %vm412, %v387, 0.0
    %v429 = vsel %vm413, %v386, 0.0
    %v430 = vsel %vm414, %v385, 0.0
    %v431 = vsel %vm415, %v384, 0.0
    %v432 = vsel %vm416, %v383, 0.0
    %v433 = vsel %vm417, %v382, 0.0
    %v434 = vsel %vm418, %v381, 0.0
    %v435 = vsel %vm419, %v380, 0.0
    %v436 = vsel %vm420, %v379, 0.0
    %v437 = vsel %vm421, %v378, 0.0
    %v438 = vsel %vm422, %v377, 0.0
    %v439 = vsel %vm423, %v376, 0.0
    %v440 = vrot.slane %v343, 1
    %v441 = vrot.slane %v344, 1
    %v442 = vrot.slane %v345, 1
    %v443 = vrot.slane %v346, 1
    %v444 = vrot.slane %v347, 1
    %v445 = vrot.slane %v348, 1
    %v446 = vrot.slane %v349, 1
    %v447 = vrot.slane %v350, 1
    %v448 = vrot.slane %v351, 1
    %v449 = vrot.slane %v352, 1
    %v450 = vrot.slane %v353, 1
    %v451 = vrot.slane %v354, 1
    %v452 = vrot.slane %v355, 1
    %v453 = vrot.slane %v356, 1
    %v454 = vrot.slane %v357, 1
    %v455 = vrot.slane %v358, 1
    %vm456 = vcmp.lt.s32.totalorder %v87, 7
    %v457 = vsel %vm456, %v454, %v455
    %v458 = vsel %vm456, %v453, %v454
    %v459 = vsel %vm456, %v452, %v453
    %v460 = vsel %vm456, %v451, %v452
    %v461 = vsel %vm456, %v450, %v451
    %v462 = vsel %vm456, %v449, %v450
    %v463 = vsel %vm456, %v448, %v449
    %v464 = vsel %vm456, %v447, %v448
    %v465 = vsel %vm456, %v446, %v447
    %v466 = vsel %vm456, %v445, %v446
    %v467 = vsel %vm456, %v444, %v445
    %v468 = vsel %vm456, %v443, %v444
    %v469 = vsel %vm456, %v442, %v443
    %v470 = vsel %vm456, %v441, %v442
    %v471 = vsel %vm456, %v440, %v441
    %v472 = vsel %vm456, %v455, %v440
    %v473 = vsel %vm311, 1, 0
    %v474 = vsel %vm312, 1, 0
    %v475 = vsel %vm313, 1, 0
    %v476 = vsel %vm314, 1, 0
    %v477 = vsel %vm315, 1, 0
    %v478 = vsel %vm316, 1, 0
    %v479 = vsel %vm317, 1, 0
    %v480 = vsel %vm318, 1, 0
    %v481 = vsel %vm319, 1, 0
    %v482 = vsel %vm320, 1, 0
    %v483 = vsel %vm321, 1, 0
    %v484 = vsel %vm322, 1, 0
    %v485 = vsel %vm323, 1, 0
    %v486 = vsel %vm324, 1, 0
    %v487 = vsel %vm325, 1, 0
    %v488 = vsel %vm326, 1, 0
    %vm489 = vcmp.eq.s32.totalorder %v473, 1
    %vm490 = vcmp.eq.s32.totalorder %v474, 1
    %vm491 = vcmp.eq.s32.totalorder %v475, 1
    %vm492 = vcmp.eq.s32.totalorder %v476, 1
    %vm493 = vcmp.eq.s32.totalorder %v477, 1
    %vm494 = vcmp.eq.s32.totalorder %v478, 1
    %vm495 = vcmp.eq.s32.totalorder %v479, 1
    %vm496 = vcmp.eq.s32.totalorder %v480, 1
    %vm497 = vcmp.eq.s32.totalorder %v481, 1
    %vm498 = vcmp.eq.s32.totalorder %v482, 1
    %vm499 = vcmp.eq.s32.totalorder %v483, 1
    %vm500 = vcmp.eq.s32.totalorder %v484, 1
    %vm501 = vcmp.eq.s32.totalorder %v485, 1
    %vm502 = vcmp.eq.s32.totalorder %v486, 1
    %vm503 = vcmp.eq.s32.totalorder %v487, 1
    %vm504 = vcmp.eq.s32.totalorder %v488, 1
    %v505 = vsel %vm489, %v471, 0.0
    %v506 = vsel %vm490, %v470, 0.0
    %v507 = vsel %vm491, %v469, 0.0
    %v508 = vsel %vm492, %v468, 0.0
    %v509 = vsel %vm493, %v467, 0.0
    %v510 = vsel %vm494, %v466, 0.0
    %v511 = vsel %vm495, %v465, 0.0
    %v512 = vsel %vm496, %v464, 0.0
    %v513 = vsel %vm497, %v463, 0.0
    %v514 = vsel %vm498, %v462, 0.0
    %v515 = vsel %vm499, %v461, 0.0
    %v516 = vsel %vm500, %v460, 0.0
    %v517 = vsel %vm501, %v459, 0.0
    %v518 = vsel %vm502, %v458, 0.0
    %v519 = vsel %vm503, %v457, 0.0
    %v520 = vsel %vm504, %v472, 0.0
    %v521 = vpack.c.bf16 %v425, %v424
    %v522 = vpack.c.bf16 %v344, %v343
    %v523 = vpack.c.bf16 %v506, %v505
    %v524 = vpack.c.bf16 %v427, %v426
    %v525 = vpack.c.bf16 %v346, %v345
    %v526 = vpack.c.bf16 %v508, %v507
    %v527 = vpack.c.bf16 %v429, %v428
    %v528 = vpack.c.bf16 %v348, %v347
    %v529 = vpack.c.bf16 %v510, %v509
    %v530 = vpack.c.bf16 %v431, %v430
    %v531 = vpack.c.bf16 %v350, %v349
    %v532 = vpack.c.bf16 %v512, %v511
    %v533 = vpack.c.bf16 %v433, %v432
    %v534 = vpack.c.bf16 %v352, %v351
    %v535 = vpack.c.bf16 %v514, %v513
    %v536 = vpack.c.bf16 %v435, %v434
    %v537 = vpack.c.bf16 %v354, %v353
    %v538 = vpack.c.bf16 %v516, %v515
    %v539 = vpack.c.bf16 %v437, %v436
    %v540 = vpack.c.bf16 %v356, %v355
    %v541 = vpack.c.bf16 %v518, %v517
    %v542 = vpack.c.bf16 %v439, %v438
    %v543 = vpack.c.bf16 %v358, %v357
    %v544 = vpack.c.bf16 %v520, %v519
    %v545 = vld [vmem:[#allocation5] sm:$0xf]
    %v546 = vld [vmem:[#allocation5 + $0x4] sm:$0xf]
    %v547 = vld [vmem:[#allocation5 + $0x8] sm:$0xf]
    %v548 = vld [vmem:[#allocation5 + $0xc] sm:$0xf]
    %v549 = vld [vmem:[#allocation5 + $0x10] sm:$0xf]
    %v550 = vld [vmem:[#allocation5 + $0x14] sm:$0xf]
    %v551 = vld [vmem:[#allocation5 + $0x18] sm:$0xf]
    %v552 = vld [vmem:[#allocation5 + $0x1c] sm:$0xf]
    %v553 = vld [vmem:[#allocation5 + $0x20] sm:$0xf]
    %v554 = vld [vmem:[#allocation5 + $0x24] sm:$0xf]
    %v555 = vld [vmem:[#allocation5 + $0x28] sm:$0xf]
    %v556 = vld [vmem:[#allocation5 + $0x2c] sm:$0xf]
    %v557 = vld [vmem:[#allocation5 + $0x30] sm:$0xf]
    %v558 = vld [vmem:[#allocation5 + $0x34] sm:$0xf]
    %v559 = vld [vmem:[#allocation5 + $0x38] sm:$0xf]
    %v560 = vld [vmem:[#allocation5 + $0x3c] sm:$0xf]
    %v561 = vld [vmem:[#allocation5 + $0x40] sm:$0xf]
    %v562 = vld [vmem:[#allocation5 + $0x44] sm:$0xf]
    %v563 = vld [vmem:[#allocation5 + $0x48] sm:$0xf]
    %v564 = vld [vmem:[#allocation5 + $0x4c] sm:$0xf]
    %v565 = vld [vmem:[#allocation5 + $0x50] sm:$0xf]
    %v566 = vld [vmem:[#allocation5 + $0x54] sm:$0xf]
    %v567 = vld [vmem:[#allocation5 + $0x58] sm:$0xf]
    %v568 = vld [vmem:[#allocation5 + $0x5c] sm:$0xf]
    %v569 = vld [vmem:[#allocation5 + $0x60] sm:$0xf]
    %v570 = vld [vmem:[#allocation5 + $0x64] sm:$0xf]
    %v571 = vld [vmem:[#allocation5 + $0x68] sm:$0xf]
    %v572 = vld [vmem:[#allocation5 + $0x6c] sm:$0xf]
    %v573 = vld [vmem:[#allocation5 + $0x70] sm:$0xf]
    %v574 = vld [vmem:[#allocation5 + $0x74] sm:$0xf]
    %v575 = vld [vmem:[#allocation5 + $0x78] sm:$0xf]
    %v576 = vld [vmem:[#allocation5 + $0x7c] sm:$0xf]
    %v577 = vld [vmem:[#allocation5 + $0x80] sm:$0xf]
    %v578 = vld [vmem:[#allocation5 + $0x84] sm:$0xf]
    %v579 = vld [vmem:[#allocation5 + $0x88] sm:$0xf]
    %v580 = vld [vmem:[#allocation5 + $0x8c] sm:$0xf]
    %v581 = vld [vmem:[#allocation5 + $0x90] sm:$0xf]
    %v582 = vld [vmem:[#allocation5 + $0x94] sm:$0xf]
    %v583 = vld [vmem:[#allocation5 + $0x98] sm:$0xf]
    %v584 = vld [vmem:[#allocation5 + $0x9c] sm:$0xf]
    %v585 = vld [vmem:[#allocation5 + $0xa0] sm:$0xf]
    %v586 = vld [vmem:[#allocation5 + $0xa4] sm:$0xf]
    %v587 = vld [vmem:[#allocation5 + $0xa8] sm:$0xf]
    %v588 = vld [vmem:[#allocation5 + $0xac] sm:$0xf]
    %v589 = vld [vmem:[#allocation5 + $0xb0] sm:$0xf]
    %v590 = vld [vmem:[#allocation5 + $0xb4] sm:$0xf]
    %v591 = vld [vmem:[#allocation5 + $0xb8] sm:$0xf]
    %v592 = vld [vmem:[#allocation5 + $0xbc] sm:$0xf]
    %v593 = vld [vmem:[#allocation7] sm:$0x1]
    %v595 = vlaneseq
    %v596 = vshrl.u32 %v595, 7
    %v597 = vsub.s32 0, %v596
    %v598 = vrot.slane %v593, %v597
    %v648 = vunpack.c.l.b16 %v545
    %v649 = vunpack.c.l.b16 %v546
    %v650 = vunpack.c.l.b16 %v547
    %v651 = vunpack.c.l.b16 %v548
    %v652 = vunpack.c.l.b16 %v549
    %v653 = vunpack.c.l.b16 %v550
    %v654 = vunpack.c.l.b16 %v551
    %v655 = vunpack.c.l.b16 %v552
    %v656 = vunpack.c.l.b16 %v553
    %v657 = vunpack.c.l.b16 %v554
    %v658 = vunpack.c.l.b16 %v555
    %v659 = vunpack.c.l.b16 %v556
    %v660 = vunpack.c.l.b16 %v557
    %v661 = vunpack.c.l.b16 %v558
    %v662 = vunpack.c.l.b16 %v559
    %v663 = vunpack.c.l.b16 %v560
    %v664 = vunpack.c.l.b16 %v561
    %v665 = vunpack.c.l.b16 %v562
    %v666 = vunpack.c.l.b16 %v563
    %v667 = vunpack.c.l.b16 %v564
    %v668 = vunpack.c.l.b16 %v565
    %v669 = vunpack.c.l.b16 %v566
    %v670 = vunpack.c.l.b16 %v567
    %v671 = vunpack.c.l.b16 %v568
    %v672 = vunpack.c.l.b16 %v569
    %v673 = vunpack.c.l.b16 %v570
    %v674 = vunpack.c.l.b16 %v571
    %v675 = vunpack.c.l.b16 %v572
    %v676 = vunpack.c.l.b16 %v573
    %v677 = vunpack.c.l.b16 %v574
    %v678 = vunpack.c.l.b16 %v575
    %v679 = vunpack.c.l.b16 %v576
    %v680 = vunpack.c.l.b16 %v577
    %v681 = vunpack.c.l.b16 %v578
    %v682 = vunpack.c.l.b16 %v579
    %v683 = vunpack.c.l.b16 %v580
    %v684 = vunpack.c.l.b16 %v581
    %v685 = vunpack.c.l.b16 %v582
    %v686 = vunpack.c.l.b16 %v583
    %v687 = vunpack.c.l.b16 %v584
    %v688 = vunpack.c.l.b16 %v585
    %v689 = vunpack.c.l.b16 %v586
    %v690 = vunpack.c.l.b16 %v587
    %v691 = vunpack.c.l.b16 %v588
    %v692 = vunpack.c.l.b16 %v589
    %v693 = vunpack.c.l.b16 %v590
    %v694 = vunpack.c.l.b16 %v591
    %v695 = vunpack.c.l.b16 %v592
    %v696 = vpack.c.b16 %v649, %v648
    %v697 = vpack.c.b16 %v651, %v650
    %v698 = vpack.c.b16 %v653, %v652
    %v699 = vpack.c.b16 %v655, %v654
    %v700 = vpack.c.b16 %v657, %v656
    %v701 = vpack.c.b16 %v659, %v658
    %v702 = vpack.c.b16 %v661, %v660
    %v703 = vpack.c.b16 %v663, %v662
    %v704 = vpack.c.b16 %v665, %v664
    %v705 = vpack.c.b16 %v667, %v666
    %v706 = vpack.c.b16 %v669, %v668
    %v707 = vpack.c.b16 %v671, %v670
    %v708 = vpack.c.b16 %v673, %v672
    %v709 = vpack.c.b16 %v675, %v674
    %v710 = vpack.c.b16 %v677, %v676
    %v711 = vpack.c.b16 %v679, %v678
    %v712 = vpack.c.b16 %v681, %v680
    %v713 = vpack.c.b16 %v683, %v682
    %v714 = vpack.c.b16 %v685, %v684
    %v715 = vpack.c.b16 %v687, %v686
    %v716 = vpack.c.b16 %v689, %v688
    %v717 = vpack.c.b16 %v691, %v690
    %v718 = vpack.c.b16 %v693, %v692
    %v719 = vpack.c.b16 %v695, %v694
    %744 = vmatprep.subr.bf16.mxu0 0
    %745 = vmatpush1.bf16.msra.mxu0 %v696
    %746 = vmatprep.subr.bf16.mxu0 0
    %747 = vmatpush1.bf16.msra.mxu0 %v697
    %748 = vmatprep.subr.bf16.mxu0 0
    %749 = vmatpush1.bf16.msra.mxu0 %v698
    %750 = vmatprep.subr.bf16.mxu0 0
    %751 = vmatpush1.bf16.msra.mxu0 %v699
    %752 = vmatprep.subr.bf16.mxu0 0
    %753 = vmatpush1.bf16.msra.mxu0 %v700
    %754 = vmatprep.subr.bf16.mxu0 0
    %755 = vmatpush1.bf16.msra.mxu0 %v701
    %756 = vmatprep.subr.bf16.mxu0 0
    %757 = vmatpush1.bf16.msra.mxu0 %v702
    %758 = vmatprep.subr.bf16.mxu0 0
    %759 = vmatpush1.bf16.msra.mxu0 %v703
    %760 = vmatprep.subr.bf16.mxu0 0
    %761 = vmatpush1.bf16.msra.mxu0 %v704
    %762 = vmatprep.subr.bf16.mxu0 0
    %763 = vmatpush1.bf16.msra.mxu0 %v705
    %764 = vmatprep.subr.bf16.mxu0 0
    %765 = vmatpush1.bf16.msra.mxu0 %v706
    %766 = vmatprep.subr.bf16.mxu0 0
    %767 = vmatpush1.bf16.msra.mxu0 %v707
    %768 = vmatprep.subr.bf16.mxu0 0
    %769 = vmatpush1.bf16.msra.mxu0 %v708
    %770 = vmatprep.subr.bf16.mxu0 0
    %771 = vmatpush1.bf16.msra.mxu0 %v709
    %772 = vmatprep.subr.bf16.mxu0 0
    %773 = vmatpush1.bf16.msra.mxu0 %v710
    %774 = vmatprep.subr.bf16.mxu0 0
    %775 = vmatpush1.bf16.msra.mxu0 %v711
    %776 = vmatprep.mubr.bf16.mxu0 %v522
    %777 = vmatmul.mubr.bf16.gmra.mrb[0].mxu0 %v521
    %v778 = vpop.f32.mrb[0].mxu0
    %v779 = vadd.f32 %v598, %v778
    %v780 = vpop.f32.mrb[0].mxu0
    %v781 = vpop.f32.mrb[0].mxu0
    %v782 = vadd.f32 %v598, %v781
    %v783 = vpop.f32.mrb[0].mxu0
    %784 = vmatprep.mubr.bf16.mxu0 %v525
    %785 = vmatmul.mubr.bf16.gmra.mrb[0].mxu0 %v524
    %v786 = vpop.f32.mrb[0].mxu0
    %v787 = vadd.f32 %v598, %v786
    %v788 = vpop.f32.mrb[0].mxu0
    %v789 = vpop.f32.mrb[0].mxu0
    %v790 = vadd.f32 %v598, %v789
    %v791 = vpop.f32.mrb[0].mxu0
    %792 = vmatprep.mubr.bf16.mxu0 %v528
    %793 = vmatmul.mubr.bf16.gmra.mrb[0].mxu0 %v527
    %v794 = vpop.f32.mrb[0].mxu0
    %v795 = vadd.f32 %v598, %v794
    %v796 = vpop.f32.mrb[0].mxu0
    %v797 = vpop.f32.mrb[0].mxu0
    %v798 = vadd.f32 %v598, %v797
    %v799 = vpop.f32.mrb[0].mxu0
    %800 = vmatprep.mubr.bf16.mxu0 %v531
    %801 = vmatmul.mubr.bf16.gmra.mrb[0].mxu0 %v530
    %v802 = vpop.f32.mrb[0].mxu0
    %v803 = vadd.f32 %v598, %v802
    %v804 = vpop.f32.mrb[0].mxu0
    %v805 = vpop.f32.mrb[0].mxu0
    %v806 = vadd.f32 %v598, %v805
    %v807 = vpop.f32.mrb[0].mxu0
    %808 = vmatprep.mubr.bf16.mxu0 %v534
    %809 = vmatmul.mubr.bf16.gmra.mrb[0].mxu0 %v533
    %v810 = vpop.f32.mrb[0].mxu0
    %v811 = vadd.f32 %v598, %v810
    %v812 = vpop.f32.mrb[0].mxu0
    %v813 = vpop.f32.mrb[0].mxu0
    %v814 = vadd.f32 %v598, %v813
    %v815 = vpop.f32.mrb[0].mxu0
    %816 = vmatprep.mubr.bf16.mxu0 %v537
    %817 = vmatmul.mubr.bf16.gmra.mrb[0].mxu0 %v536
    %v818 = vpop.f32.mrb[0].mxu0
    %v819 = vadd.f32 %v598, %v818
    %v820 = vpop.f32.mrb[0].mxu0
    %v821 = vpop.f32.mrb[0].mxu0
    %v822 = vadd.f32 %v598, %v821
    %v823 = vpop.f32.mrb[0].mxu0
    %824 = vmatprep.mubr.bf16.mxu0 %v540
    %825 = vmatmul.mubr.bf16.gmra.mrb[0].mxu0 %v539
    %v826 = vpop.f32.mrb[0].mxu0
    %v827 = vadd.f32 %v598, %v826
    %v828 = vpop.f32.mrb[0].mxu0
    %v829 = vpop.f32.mrb[0].mxu0
    %v830 = vadd.f32 %v598, %v829
    %v831 = vpop.f32.mrb[0].mxu0
    %832 = vmatprep.mubr.bf16.mxu0 %v543
    %833 = vmatmul.mubr.bf16.gmra.mrb[0].mxu0 %v542
    %v834 = vpop.f32.mrb[0].mxu0
    %v835 = vadd.f32 %v598, %v834
    %v836 = vpop.f32.mrb[0].mxu0
    %v837 = vpop.f32.mrb[0].mxu0
    %v838 = vadd.f32 %v598, %v837
    %v839 = vpop.f32.mrb[0].mxu0
    %840 = vdwg.mxu0
    %841 = vmatprep.subr.bf16.mxu0 0
    %842 = vmatpush1.bf16.msra.mxu0 %v712
    %843 = vmatprep.subr.bf16.mxu0 0
    %844 = vmatpush1.bf16.msra.mxu0 %v713
    %845 = vmatprep.subr.bf16.mxu0 0
    %846 = vmatpush1.bf16.msra.mxu0 %v714
    %847 = vmatprep.subr.bf16.mxu0 0
    %848 = vmatpush1.bf16.msra.mxu0 %v715
    %849 = vmatprep.subr.bf16.mxu0 0
    %850 = vmatpush1.bf16.msra.mxu0 %v716
    %851 = vmatprep.subr.bf16.mxu0 0
    %852 = vmatpush1.bf16.msra.mxu0 %v717
    %853 = vmatprep.subr.bf16.mxu0 0
    %854 = vmatpush1.bf16.msra.mxu0 %v718
    %855 = vmatprep.subr.bf16.mxu0 0
    %856 = vmatpush1.bf16.msra.mxu0 %v719
    %857 = vmatprep.subr.bf16.mxu0 0
    %858 = vmatpush1.bf16.msra.mxu0 0
    %859 = vmatprep.subr.bf16.mxu0 0
    %860 = vmatpush1.bf16.msra.mxu0 0
    %861 = vmatprep.subr.bf16.mxu0 0
    %862 = vmatpush1.bf16.msra.mxu0 0
    %863 = vmatprep.subr.bf16.mxu0 0
    %864 = vmatpush1.bf16.msra.mxu0 0
    %865 = vmatprep.subr.bf16.mxu0 0
    %866 = vmatpush1.bf16.msra.mxu0 0
    %867 = vmatprep.subr.bf16.mxu0 0
    %868 = vmatpush1.bf16.msra.mxu0 0
    %869 = vmatprep.subr.bf16.mxu0 0
    %870 = vmatpush1.bf16.msra.mxu0 0
    %871 = vmatprep.subr.bf16.mxu0 0
    %872 = vmatpush1.bf16.msra.mxu0 0
    %873 = vmatprep.mubr.bf16.mxu0 0
    %874 = vmatmul.mubr.bf16.gmra.mrb[0].mxu0 %v523
    %v875 = vpop.f32.mrb[0].mxu0
    %v876 = vadd.f32 %v779, %v875
    %v877 = vpop.f32.mrb[0].mxu0
    %v878 = vpop.f32.mrb[0].mxu0
    %v879 = vadd.f32 %v782, %v878
    %v880 = vpop.f32.mrb[0].mxu0
    %881 = vmatprep.mubr.bf16.mxu0 0
    %882 = vmatmul.mubr.bf16.gmra.mrb[0].mxu0 %v526
    %v883 = vpop.f32.mrb[0].mxu0
    %v884 = vadd.f32 %v787, %v883
    %v885 = vpop.f32.mrb[0].mxu0
    %v886 = vpop.f32.mrb[0].mxu0
    %v887 = vadd.f32 %v790, %v886
    %v888 = vpop.f32.mrb[0].mxu0
    %889 = vmatprep.mubr.bf16.mxu0 0
    %890 = vmatmul.mubr.bf16.gmra.mrb[0].mxu0 %v529
    %v891 = vpop.f32.mrb[0].mxu0
    %v892 = vadd.f32 %v795, %v891
    %v893 = vpop.f32.mrb[0].mxu0
    %v894 = vpop.f32.mrb[0].mxu0
    %v895 = vadd.f32 %v798, %v894
    %v896 = vpop.f32.mrb[0].mxu0
    %897 = vmatprep.mubr.bf16.mxu0 0
    %898 = vmatmul.mubr.bf16.gmra.mrb[0].mxu0 %v532
    %v899 = vpop.f32.mrb[0].mxu0
    %v900 = vadd.f32 %v803, %v899
    %v901 = vpop.f32.mrb[0].mxu0
    %v902 = vpop.f32.mrb[0].mxu0
    %v903 = vadd.f32 %v806, %v902
    %v904 = vpop.f32.mrb[0].mxu0
    %905 = vmatprep.mubr.bf16.mxu0 0
    %906 = vmatmul.mubr.bf16.gmra.mrb[0].mxu0 %v535
    %v907 = vpop.f32.mrb[0].mxu0
    %v908 = vadd.f32 %v811, %v907
    %v909 = vpop.f32.mrb[0].mxu0
    %v910 = vpop.f32.mrb[0].mxu0
    %v911 = vadd.f32 %v814, %v910
    %v912 = vpop.f32.mrb[0].mxu0
    %913 = vmatprep.mubr.bf16.mxu0 0
    %914 = vmatmul.mubr.bf16.gmra.mrb[0].mxu0 %v538
    %v915 = vpop.f32.mrb[0].mxu0
    %v916 = vadd.f32 %v819, %v915
    %v917 = vpop.f32.mrb[0].mxu0
    %v918 = vpop.f32.mrb[0].mxu0
    %v919 = vadd.f32 %v822, %v918
    %v920 = vpop.f32.mrb[0].mxu0
    %921 = vmatprep.mubr.bf16.mxu0 0
    %922 = vmatmul.mubr.bf16.gmra.mrb[0].mxu0 %v541
    %v923 = vpop.f32.mrb[0].mxu0
    %v924 = vadd.f32 %v827, %v923
    %v925 = vpop.f32.mrb[0].mxu0
    %v926 = vpop.f32.mrb[0].mxu0
    %v927 = vadd.f32 %v830, %v926
    %v928 = vpop.f32.mrb[0].mxu0
    %929 = vmatprep.mubr.bf16.mxu0 0
    %930 = vmatmul.mubr.bf16.gmra.mrb[0].mxu0 %v544
    %v931 = vpop.f32.mrb[0].mxu0
    %v932 = vadd.f32 %v835, %v931
    %v933 = vpop.f32.mrb[0].mxu0
    %v934 = vpop.f32.mrb[0].mxu0
    %v935 = vadd.f32 %v838, %v934
    %v936 = vpop.f32.mrb[0].mxu0
    %937 = vdwg.mxu0
    %v938 = vmax.f32 %v876, 0.0
    %v939 = vmax.f32 %v879, 0.0
    %v940 = vmax.f32 %v884, 0.0
    %v941 = vmax.f32 %v887, 0.0
    %v942 = vmax.f32 %v892, 0.0
    %v943 = vmax.f32 %v895, 0.0
    %v944 = vmax.f32 %v900, 0.0
    %v945 = vmax.f32 %v903, 0.0
    %v946 = vmax.f32 %v908, 0.0
    %v947 = vmax.f32 %v911, 0.0
    %v948 = vmax.f32 %v916, 0.0
    %v949 = vmax.f32 %v919, 0.0
    %v950 = vmax.f32 %v924, 0.0
    %v951 = vmax.f32 %v927, 0.0
    %v952 = vmax.f32 %v932, 0.0
    %v953 = vmax.f32 %v935, 0.0
    %v954 = vrot.slane %v938, 7
    %v955 = vrot.slane %v939, 7
    %v956 = vrot.slane %v940, 7
    %v957 = vrot.slane %v941, 7
    %v958 = vrot.slane %v942, 7
    %v959 = vrot.slane %v943, 7
    %v960 = vrot.slane %v944, 7
    %v961 = vrot.slane %v945, 7
    %v962 = vrot.slane %v946, 7
    %v963 = vrot.slane %v947, 7
    %v964 = vrot.slane %v948, 7
    %v965 = vrot.slane %v949, 7
    %v966 = vrot.slane %v950, 7
    %v967 = vrot.slane %v951, 7
    %v968 = vrot.slane %v952, 7
    %v969 = vrot.slane %v953, 7
    %v970 = vsel %vm375, %v968, %v969
    %v971 = vsel %vm375, %v967, %v968
    %v972 = vsel %vm375, %v966, %v967
    %v973 = vsel %vm375, %v965, %v966
    %v974 = vsel %vm375, %v964, %v965
    %v975 = vsel %vm375, %v963, %v964
    %v976 = vsel %vm375, %v962, %v963
    %v977 = vsel %vm375, %v961, %v962
    %v978 = vsel %vm375, %v960, %v961
    %v979 = vsel %vm375, %v959, %v960
    %v980 = vsel %vm375, %v958, %v959
    %v981 = vsel %vm375, %v957, %v958
    %v982 = vsel %vm375, %v956, %v957
    %v983 = vsel %vm375, %v955, %v956
    %v984 = vsel %vm375, %v954, %v955
    %v985 = vsel %vm375, %v969, %v954
    %v986 = vsel %vm408, %v985, 0.0
    %v987 = vsel %vm409, %v984, 0.0
    %v988 = vsel %vm410, %v983, 0.0
    %v989 = vsel %vm411, %v982, 0.0
    %v990 = vsel %vm412, %v981, 0.0
    %v991 = vsel %vm413, %v980, 0.0
    %v992 = vsel %vm414, %v979, 0.0
    %v993 = vsel %vm415, %v978, 0.0
    %v994 = vsel %vm416, %v977, 0.0
    %v995 = vsel %vm417, %v976, 0.0
    %v996 = vsel %vm418, %v975, 0.0
    %v997 = vsel %vm419, %v974, 0.0
    %v998 = vsel %vm420, %v973, 0.0
    %v999 = vsel %vm421, %v972, 0.0
    %v1000 = vsel %vm422, %v971, 0.0
    %v1001 = vsel %vm423, %v970, 0.0
    %v1002 = vrot.slane %v938, 1
    %v1003 = vrot.slane %v939, 1
    %v1004 = vrot.slane %v940, 1
    %v1005 = vrot.slane %v941, 1
    %v1006 = vrot.slane %v942, 1
    %v1007 = vrot.slane %v943, 1
    %v1008 = vrot.slane %v944, 1
    %v1009 = vrot.slane %v945, 1
    %v1010 = vrot.slane %v946, 1
    %v1011 = vrot.slane %v947, 1
    %v1012 = vrot.slane %v948, 1
    %v1013 = vrot.slane %v949, 1
    %v1014 = vrot.slane %v950, 1
    %v1015 = vrot.slane %v951, 1
    %v1016 = vrot.slane %v952, 1
    %v1017 = vrot.slane %v953, 1
    %v1018 = vsel %vm456, %v1016, %v1017
    %v1019 = vsel %vm456, %v1015, %v1016
    %v1020 = vsel %vm456, %v1014, %v1015
    %v1021 = vsel %vm456, %v1013, %v1014
    %v1022 = vsel %vm456, %v1012, %v1013
    %v1023 = vsel %vm456, %v1011, %v1012
    %v1024 = vsel %vm456, %v1010, %v1011
    %v1025 = vsel %vm456, %v1009, %v1010
    %v1026 = vsel %vm456, %v1008, %v1009
    %v1027 = vsel %vm456, %v1007, %v1008
    %v1028 = vsel %vm456, %v1006, %v1007
    %v1029 = vsel %vm456, %v1005, %v1006
    %v1030 = vsel %vm456, %v1004, %v1005
    %v1031 = vsel %vm456, %v1003, %v1004
    %v1032 = vsel %vm456, %v1002, %v1003
    %v1033 = vsel %vm456, %v1017, %v1002
    %v1034 = vsel %vm489, %v1032, 0.0
    %v1035 = vsel %vm490, %v1031, 0.0
    %v1036 = vsel %vm491, %v1030, 0.0
    %v1037 = vsel %vm492, %v1029, 0.0
    %v1038 = vsel %vm493, %v1028, 0.0
    %v1039 = vsel %vm494, %v1027, 0.0
    %v1040 = vsel %vm495, %v1026, 0.0
    %v1041 = vsel %vm496, %v1025, 0.0
    %v1042 = vsel %vm497, %v1024, 0.0
    %v1043 = vsel %vm498, %v1023, 0.0
    %v1044 = vsel %vm499, %v1022, 0.0
    %v1045 = vsel %vm500, %v1021, 0.0
    %v1046 = vsel %vm501, %v1020, 0.0
    %v1047 = vsel %vm502, %v1019, 0.0
    %v1048 = vsel %vm503, %v1018, 0.0
    %v1049 = vsel %vm504, %v1033, 0.0
    %v1050 = vpack.c.bf16 %v987, %v986
    %v1051 = vpack.c.bf16 %v939, %v938
    %v1052 = vpack.c.bf16 %v1035, %v1034
    %v1053 = vpack.c.bf16 %v989, %v988
    %v1054 = vpack.c.bf16 %v941, %v940
    %v1055 = vpack.c.bf16 %v1037, %v1036
    %v1056 = vpack.c.bf16 %v991, %v990
    %v1057 = vpack.c.bf16 %v943, %v942
    %v1058 = vpack.c.bf16 %v1039, %v1038
    %v1059 = vpack.c.bf16 %v993, %v992
    %v1060 = vpack.c.bf16 %v945, %v944
    %v1061 = vpack.c.bf16 %v1041, %v1040
    %v1062 = vpack.c.bf16 %v995, %v994
    %v1063 = vpack.c.bf16 %v947, %v946
    %v1064 = vpack.c.bf16 %v1043, %v1042
    %v1065 = vpack.c.bf16 %v997, %v996
    %v1066 = vpack.c.bf16 %v949, %v948
    %v1067 = vpack.c.bf16 %v1045, %v1044
    %v1068 = vpack.c.bf16 %v999, %v998
    %v1069 = vpack.c.bf16 %v951, %v950
    %v1070 = vpack.c.bf16 %v1047, %v1046
    %v1071 = vpack.c.bf16 %v1001, %v1000
    %v1072 = vpack.c.bf16 %v953, %v952
    %v1073 = vpack.c.bf16 %v1049, %v1048
    %v1074 = vld [vmem:[#allocation8] sm:$0xf]
    %v1075 = vld [vmem:[#allocation8 + $0x4] sm:$0xf]
    %v1076 = vld [vmem:[#allocation8 + $0x8] sm:$0xf]
    %v1077 = vld [vmem:[#allocation8 + $0xc] sm:$0xf]
    %v1078 = vld [vmem:[#allocation8 + $0x10] sm:$0xf]
    %v1079 = vld [vmem:[#allocation8 + $0x14] sm:$0xf]
    %v1080 = vld [vmem:[#allocation8 + $0x18] sm:$0xf]
    %v1081 = vld [vmem:[#allocation8 + $0x1c] sm:$0xf]
    %v1082 = vld [vmem:[#allocation8 + $0x20] sm:$0xf]
    %v1083 = vld [vmem:[#allocation8 + $0x24] sm:$0xf]
    %v1084 = vld [vmem:[#allocation8 + $0x28] sm:$0xf]
    %v1085 = vld [vmem:[#allocation8 + $0x2c] sm:$0xf]
    %v1086 = vld [vmem:[#allocation8 + $0x30] sm:$0xf]
    %v1087 = vld [vmem:[#allocation8 + $0x34] sm:$0xf]
    %v1088 = vld [vmem:[#allocation8 + $0x38] sm:$0xf]
    %v1089 = vld [vmem:[#allocation8 + $0x3c] sm:$0xf]
    %v1090 = vld [vmem:[#allocation8 + $0x40] sm:$0xf]
    %v1091 = vld [vmem:[#allocation8 + $0x44] sm:$0xf]
    %v1092 = vld [vmem:[#allocation8 + $0x48] sm:$0xf]
    %v1093 = vld [vmem:[#allocation8 + $0x4c] sm:$0xf]
    %v1094 = vld [vmem:[#allocation8 + $0x50] sm:$0xf]
    %v1095 = vld [vmem:[#allocation8 + $0x54] sm:$0xf]
    %v1096 = vld [vmem:[#allocation8 + $0x58] sm:$0xf]
    %v1097 = vld [vmem:[#allocation8 + $0x5c] sm:$0xf]
    %v1098 = vld [vmem:[#allocation8 + $0x60] sm:$0xf]
    %v1099 = vld [vmem:[#allocation8 + $0x64] sm:$0xf]
    %v1100 = vld [vmem:[#allocation8 + $0x68] sm:$0xf]
    %v1101 = vld [vmem:[#allocation8 + $0x6c] sm:$0xf]
    %v1102 = vld [vmem:[#allocation8 + $0x70] sm:$0xf]
    %v1103 = vld [vmem:[#allocation8 + $0x74] sm:$0xf]
    %v1104 = vld [vmem:[#allocation8 + $0x78] sm:$0xf]
    %v1105 = vld [vmem:[#allocation8 + $0x7c] sm:$0xf]
    %v1106 = vld [vmem:[#allocation8 + $0x80] sm:$0xf]
    %v1107 = vld [vmem:[#allocation8 + $0x84] sm:$0xf]
    %v1108 = vld [vmem:[#allocation8 + $0x88] sm:$0xf]
    %v1109 = vld [vmem:[#allocation8 + $0x8c] sm:$0xf]
    %v1110 = vld [vmem:[#allocation8 + $0x90] sm:$0xf]
    %v1111 = vld [vmem:[#allocation8 + $0x94] sm:$0xf]
    %v1112 = vld [vmem:[#allocation8 + $0x98] sm:$0xf]
    %v1113 = vld [vmem:[#allocation8 + $0x9c] sm:$0xf]
    %v1114 = vld [vmem:[#allocation8 + $0xa0] sm:$0xf]
    %v1115 = vld [vmem:[#allocation8 + $0xa4] sm:$0xf]
    %v1116 = vld [vmem:[#allocation8 + $0xa8] sm:$0xf]
    %v1117 = vld [vmem:[#allocation8 + $0xac] sm:$0xf]
    %v1118 = vld [vmem:[#allocation8 + $0xb0] sm:$0xf]
    %v1119 = vld [vmem:[#allocation8 + $0xb4] sm:$0xf]
    %v1120 = vld [vmem:[#allocation8 + $0xb8] sm:$0xf]
    %v1121 = vld [vmem:[#allocation8 + $0xbc] sm:$0xf]
    %v1122 = vld [vmem:[#allocation10] sm:$0x1]
    %v1124 = vlaneseq
    %v1125 = vshrl.u32 %v1124, 7
    %v1126 = vsub.s32 0, %v1125
    %v1127 = vrot.slane %v1122, %v1126
    %v1177 = vunpack.c.l.b16 %v1074
    %v1178 = vunpack.c.l.b16 %v1075
    %v1179 = vunpack.c.l.b16 %v1076
    %v1180 = vunpack.c.l.b16 %v1077
    %v1181 = vunpack.c.l.b16 %v1078
    %v1182 = vunpack.c.l.b16 %v1079
    %v1183 = vunpack.c.l.b16 %v1080
    %v1184 = vunpack.c.l.b16 %v1081
    %v1185 = vunpack.c.l.b16 %v1082
    %v1186 = vunpack.c.l.b16 %v1083
    %v1187 = vunpack.c.l.b16 %v1084
    %v1188 = vunpack.c.l.b16 %v1085
    %v1189 = vunpack.c.l.b16 %v1086
    %v1190 = vunpack.c.l.b16 %v1087
    %v1191 = vunpack.c.l.b16 %v1088
    %v1192 = vunpack.c.l.b16 %v1089
    %v1193 = vunpack.c.l.b16 %v1090
    %v1194 = vunpack.c.l.b16 %v1091
    %v1195 = vunpack.c.l.b16 %v1092
    %v1196 = vunpack.c.l.b16 %v1093
    %v1197 = vunpack.c.l.b16 %v1094
    %v1198 = vunpack.c.l.b16 %v1095
    %v1199 = vunpack.c.l.b16 %v1096
    %v1200 = vunpack.c.l.b16 %v1097
    %v1201 = vunpack.c.l.b16 %v1098
    %v1202 = vunpack.c.l.b16 %v1099
    %v1203 = vunpack.c.l.b16 %v1100
    %v1204 = vunpack.c.l.b16 %v1101
    %v1205 = vunpack.c.l.b16 %v1102
    %v1206 = vunpack.c.l.b16 %v1103
    %v1207 = vunpack.c.l.b16 %v1104
    %v1208 = vunpack.c.l.b16 %v1105
    %v1209 = vunpack.c.l.b16 %v1106
    %v1210 = vunpack.c.l.b16 %v1107
    %v1211 = vunpack.c.l.b16 %v1108
    %v1212 = vunpack.c.l.b16 %v1109
    %v1213 = vunpack.c.l.b16 %v1110
    %v1214 = vunpack.c.l.b16 %v1111
    %v1215 = vunpack.c.l.b16 %v1112
    %v1216 = vunpack.c.l.b16 %v1113
    %v1217 = vunpack.c.l.b16 %v1114
    %v1218 = vunpack.c.l.b16 %v1115
    %v1219 = vunpack.c.l.b16 %v1116
    %v1220 = vunpack.c.l.b16 %v1117
    %v1221 = vunpack.c.l.b16 %v1118
    %v1222 = vunpack.c.l.b16 %v1119
    %v1223 = vunpack.c.l.b16 %v1120
    %v1224 = vunpack.c.l.b16 %v1121
    %v1225 = vpack.c.b16 %v1178, %v1177
    %v1226 = vpack.c.b16 %v1180, %v1179
    %v1227 = vpack.c.b16 %v1182, %v1181
    %v1228 = vpack.c.b16 %v1184, %v1183
    %v1229 = vpack.c.b16 %v1186, %v1185
    %v1230 = vpack.c.b16 %v1188, %v1187
    %v1231 = vpack.c.b16 %v1190, %v1189
    %v1232 = vpack.c.b16 %v1192, %v1191
    %v1233 = vpack.c.b16 %v1194, %v1193
    %v1234 = vpack.c.b16 %v1196, %v1195
    %v1235 = vpack.c.b16 %v1198, %v1197
    %v1236 = vpack.c.b16 %v1200, %v1199
    %v1237 = vpack.c.b16 %v1202, %v1201
    %v1238 = vpack.c.b16 %v1204, %v1203
    %v1239 = vpack.c.b16 %v1206, %v1205
    %v1240 = vpack.c.b16 %v1208, %v1207
    %v1241 = vpack.c.b16 %v1210, %v1209
    %v1242 = vpack.c.b16 %v1212, %v1211
    %v1243 = vpack.c.b16 %v1214, %v1213
    %v1244 = vpack.c.b16 %v1216, %v1215
    %v1245 = vpack.c.b16 %v1218, %v1217
    %v1246 = vpack.c.b16 %v1220, %v1219
    %v1247 = vpack.c.b16 %v1222, %v1221
    %v1248 = vpack.c.b16 %v1224, %v1223
    %1273 = vmatprep.subr.bf16.mxu0 0
    %1274 = vmatpush1.bf16.msra.mxu0 %v1225
    %1275 = vmatprep.subr.bf16.mxu0 0
    %1276 = vmatpush1.bf16.msra.mxu0 %v1226
    %1277 = vmatprep.subr.bf16.mxu0 0
    %1278 = vmatpush1.bf16.msra.mxu0 %v1227
    %1279 = vmatprep.subr.bf16.mxu0 0
    %1280 = vmatpush1.bf16.msra.mxu0 %v1228
    %1281 = vmatprep.subr.bf16.mxu0 0
    %1282 = vmatpush1.bf16.msra.mxu0 %v1229
    %1283 = vmatprep.subr.bf16.mxu0 0
    %1284 = vmatpush1.bf16.msra.mxu0 %v1230
    %1285 = vmatprep.subr.bf16.mxu0 0
    %1286 = vmatpush1.bf16.msra.mxu0 %v1231
    %1287 = vmatprep.subr.bf16.mxu0 0
    %1288 = vmatpush1.bf16.msra.mxu0 %v1232
    %1289 = vmatprep.subr.bf16.mxu0 0
    %1290 = vmatpush1.bf16.msra.mxu0 %v1233
    %1291 = vmatprep.subr.bf16.mxu0 0
    %1292 = vmatpush1.bf16.msra.mxu0 %v1234
    %1293 = vmatprep.subr.bf16.mxu0 0
    %1294 = vmatpush1.bf16.msra.mxu0 %v1235
    %1295 = vmatprep.subr.bf16.mxu0 0
    %1296 = vmatpush1.bf16.msra.mxu0 %v1236
    %1297 = vmatprep.subr.bf16.mxu0 0
    %1298 = vmatpush1.bf16.msra.mxu0 %v1237
    %1299 = vmatprep.subr.bf16.mxu0 0
    %1300 = vmatpush1.bf16.msra.mxu0 %v1238
    %1301 = vmatprep.subr.bf16.mxu0 0
    %1302 = vmatpush1.bf16.msra.mxu0 %v1239
    %1303 = vmatprep.subr.bf16.mxu0 0
    %1304 = vmatpush1.bf16.msra.mxu0 %v1240
    %1305 = vmatprep.mubr.bf16.mxu0 %v1051
    %1306 = vmatmul.mubr.bf16.gmra.mrb[0].mxu0 %v1050
    %v1307 = vpop.f32.mrb[0].mxu0
    %v1308 = vadd.f32 %v1127, %v1307
    %v1309 = vpop.f32.mrb[0].mxu0
    %v1310 = vpop.f32.mrb[0].mxu0
    %v1311 = vadd.f32 %v1127, %v1310
    %v1312 = vpop.f32.mrb[0].mxu0
    %1313 = vmatprep.mubr.bf16.mxu0 %v1054
    %1314 = vmatmul.mubr.bf16.gmra.mrb[0].mxu0 %v1053
    %v1315 = vpop.f32.mrb[0].mxu0
    %v1316 = vadd.f32 %v1127, %v1315
    %v1317 = vpop.f32.mrb[0].mxu0
    %v1318 = vpop.f32.mrb[0].mxu0
    %v1319 = vadd.f32 %v1127, %v1318
    %v1320 = vpop.f32.mrb[0].mxu0
    %1321 = vmatprep.mubr.bf16.mxu0 %v1057
    %1322 = vmatmul.mubr.bf16.gmra.mrb[0].mxu0 %v1056
    %v1323 = vpop.f32.mrb[0].mxu0
    %v1324 = vadd.f32 %v1127, %v1323
    %v1325 = vpop.f32.mrb[0].mxu0
    %v1326 = vpop.f32.mrb[0].mxu0
    %v1327 = vadd.f32 %v1127, %v1326
    %v1328 = vpop.f32.mrb[0].mxu0
    %1329 = vmatprep.mubr.bf16.mxu0 %v1060
    %1330 = vmatmul.mubr.bf16.gmra.mrb[0].mxu0 %v1059
    %v1331 = vpop.f32.mrb[0].mxu0
    %v1332 = vadd.f32 %v1127, %v1331
    %v1333 = vpop.f32.mrb[0].mxu0
    %v1334 = vpop.f32.mrb[0].mxu0
    %v1335 = vadd.f32 %v1127, %v1334
    %v1336 = vpop.f32.mrb[0].mxu0
    %1337 = vmatprep.mubr.bf16.mxu0 %v1063
    %1338 = vmatmul.mubr.bf16.gmra.mrb[0].mxu0 %v1062
    %v1339 = vpop.f32.mrb[0].mxu0
    %v1340 = vadd.f32 %v1127, %v1339
    %v1341 = vpop.f32.mrb[0].mxu0
    %v1342 = vpop.f32.mrb[0].mxu0
    %v1343 = vadd.f32 %v1127, %v1342
    %v1344 = vpop.f32.mrb[0].mxu0
    %1345 = vmatprep.mubr.bf16.mxu0 %v1066
    %1346 = vmatmul.mubr.bf16.gmra.mrb[0].mxu0 %v1065
    %v1347 = vpop.f32.mrb[0].mxu0
    %v1348 = vadd.f32 %v1127, %v1347
    %v1349 = vpop.f32.mrb[0].mxu0
    %v1350 = vpop.f32.mrb[0].mxu0
    %v1351 = vadd.f32 %v1127, %v1350
    %v1352 = vpop.f32.mrb[0].mxu0
    %1353 = vmatprep.mubr.bf16.mxu0 %v1069
    %1354 = vmatmul.mubr.bf16.gmra.mrb[0].mxu0 %v1068
    %v1355 = vpop.f32.mrb[0].mxu0
    %v1356 = vadd.f32 %v1127, %v1355
    %v1357 = vpop.f32.mrb[0].mxu0
    %v1358 = vpop.f32.mrb[0].mxu0
    %v1359 = vadd.f32 %v1127, %v1358
    %v1360 = vpop.f32.mrb[0].mxu0
    %1361 = vmatprep.mubr.bf16.mxu0 %v1072
    %1362 = vmatmul.mubr.bf16.gmra.mrb[0].mxu0 %v1071
    %v1363 = vpop.f32.mrb[0].mxu0
    %v1364 = vadd.f32 %v1127, %v1363
    %v1365 = vpop.f32.mrb[0].mxu0
    %v1366 = vpop.f32.mrb[0].mxu0
    %v1367 = vadd.f32 %v1127, %v1366
    %v1368 = vpop.f32.mrb[0].mxu0
    %1369 = vdwg.mxu0
    %1370 = vmatprep.subr.bf16.mxu0 0
    %1371 = vmatpush1.bf16.msra.mxu0 %v1241
    %1372 = vmatprep.subr.bf16.mxu0 0
    %1373 = vmatpush1.bf16.msra.mxu0 %v1242
    %1374 = vmatprep.subr.bf16.mxu0 0
    %1375 = vmatpush1.bf16.msra.mxu0 %v1243
    %1376 = vmatprep.subr.bf16.mxu0 0
    %1377 = vmatpush1.bf16.msra.mxu0 %v1244
    %1378 = vmatprep.subr.bf16.mxu0 0
    %1379 = vmatpush1.bf16.msra.mxu0 %v1245
    %1380 = vmatprep.subr.bf16.mxu0 0
    %1381 = vmatpush1.bf16.msra.mxu0 %v1246
    %1382 = vmatprep.subr.bf16.mxu0 0
    %1383 = vmatpush1.bf16.msra.mxu0 %v1247
    %1384 = vmatprep.subr.bf16.mxu0 0
    %1385 = vmatpush1.bf16.msra.mxu0 %v1248
    %1386 = vmatprep.subr.bf16.mxu0 0
    %1387 = vmatpush1.bf16.msra.mxu0 0
    %1388 = vmatprep.subr.bf16.mxu0 0
    %1389 = vmatpush1.bf16.msra.mxu0 0
    %1390 = vmatprep.subr.bf16.mxu0 0
    %1391 = vmatpush1.bf16.msra.mxu0 0
    %1392 = vmatprep.subr.bf16.mxu0 0
    %1393 = vmatpush1.bf16.msra.mxu0 0
    %1394 = vmatprep.subr.bf16.mxu0 0
    %1395 = vmatpush1.bf16.msra.mxu0 0
    %1396 = vmatprep.subr.bf16.mxu0 0
    %1397 = vmatpush1.bf16.msra.mxu0 0
    %1398 = vmatprep.subr.bf16.mxu0 0
    %1399 = vmatpush1.bf16.msra.mxu0 0
    %1400 = vmatprep.subr.bf16.mxu0 0
    %1401 = vmatpush1.bf16.msra.mxu0 0
    %1402 = vmatprep.mubr.bf16.mxu0 0
    %1403 = vmatmul.mubr.bf16.gmra.mrb[0].mxu0 %v1052
    %v1404 = vpop.f32.mrb[0].mxu0
    %v1405 = vadd.f32 %v1308, %v1404
    %v1406 = vpop.f32.mrb[0].mxu0
    %v1407 = vpop.f32.mrb[0].mxu0
    %v1408 = vadd.f32 %v1311, %v1407
    %v1409 = vpop.f32.mrb[0].mxu0
    %1410 = vmatprep.mubr.bf16.mxu0 0
    %1411 = vmatmul.mubr.bf16.gmra.mrb[0].mxu0 %v1055
    %v1412 = vpop.f32.mrb[0].mxu0
    %v1413 = vadd.f32 %v1316, %v1412
    %v1414 = vpop.f32.mrb[0].mxu0
    %v1415 = vpop.f32.mrb[0].mxu0
    %v1416 = vadd.f32 %v1319, %v1415
    %v1417 = vpop.f32.mrb[0].mxu0
    %1418 = vmatprep.mubr.bf16.mxu0 0
    %1419 = vmatmul.mubr.bf16.gmra.mrb[0].mxu0 %v1058
    %v1420 = vpop.f32.mrb[0].mxu0
    %v1421 = vadd.f32 %v1324, %v1420
    %v1422 = vpop.f32.mrb[0].mxu0
    %v1423 = vpop.f32.mrb[0].mxu0
    %v1424 = vadd.f32 %v1327, %v1423
    %v1425 = vpop.f32.mrb[0].mxu0
    %1426 = vmatprep.mubr.bf16.mxu0 0
    %1427 = vmatmul.mubr.bf16.gmra.mrb[0].mxu0 %v1061
    %v1428 = vpop.f32.mrb[0].mxu0
    %v1429 = vadd.f32 %v1332, %v1428
    %v1430 = vpop.f32.mrb[0].mxu0
    %v1431 = vpop.f32.mrb[0].mxu0
    %v1432 = vadd.f32 %v1335, %v1431
    %v1433 = vpop.f32.mrb[0].mxu0
    %1434 = vmatprep.mubr.bf16.mxu0 0
    %1435 = vmatmul.mubr.bf16.gmra.mrb[0].mxu0 %v1064
    %v1436 = vpop.f32.mrb[0].mxu0
    %v1437 = vadd.f32 %v1340, %v1436
    %v1438 = vpop.f32.mrb[0].mxu0
    %v1439 = vpop.f32.mrb[0].mxu0
    %v1440 = vadd.f32 %v1343, %v1439
    %v1441 = vpop.f32.mrb[0].mxu0
    %1442 = vmatprep.mubr.bf16.mxu0 0
    %1443 = vmatmul.mubr.bf16.gmra.mrb[0].mxu0 %v1067
    %v1444 = vpop.f32.mrb[0].mxu0
    %v1445 = vadd.f32 %v1348, %v1444
    %v1446 = vpop.f32.mrb[0].mxu0
    %v1447 = vpop.f32.mrb[0].mxu0
    %v1448 = vadd.f32 %v1351, %v1447
    %v1449 = vpop.f32.mrb[0].mxu0
    %1450 = vmatprep.mubr.bf16.mxu0 0
    %1451 = vmatmul.mubr.bf16.gmra.mrb[0].mxu0 %v1070
    %v1452 = vpop.f32.mrb[0].mxu0
    %v1453 = vadd.f32 %v1356, %v1452
    %v1454 = vpop.f32.mrb[0].mxu0
    %v1455 = vpop.f32.mrb[0].mxu0
    %v1456 = vadd.f32 %v1359, %v1455
    %v1457 = vpop.f32.mrb[0].mxu0
    %1458 = vmatprep.mubr.bf16.mxu0 0
    %1459 = vmatmul.mubr.bf16.gmra.mrb[0].mxu0 %v1073
    %v1460 = vpop.f32.mrb[0].mxu0
    %v1461 = vadd.f32 %v1364, %v1460
    %v1462 = vpop.f32.mrb[0].mxu0
    %v1463 = vpop.f32.mrb[0].mxu0
    %v1464 = vadd.f32 %v1367, %v1463
    %v1465 = vpop.f32.mrb[0].mxu0
    %1466 = vdwg.mxu0
    %v1467 = vadd.f32 %v1405, %v343
    %v1468 = vadd.f32 %v1408, %v344
    %v1469 = vadd.f32 %v1413, %v345
    %v1470 = vadd.f32 %v1416, %v346
    %v1471 = vadd.f32 %v1421, %v347
    %v1472 = vadd.f32 %v1424, %v348
    %v1473 = vadd.f32 %v1429, %v349
    %v1474 = vadd.f32 %v1432, %v350
    %v1475 = vadd.f32 %v1437, %v351
    %v1476 = vadd.f32 %v1440, %v352
    %v1477 = vadd.f32 %v1445, %v353
    %v1478 = vadd.f32 %v1448, %v354
    %v1479 = vadd.f32 %v1453, %v355
    %v1480 = vadd.f32 %v1456, %v356
    %v1481 = vadd.f32 %v1461, %v357
    %v1482 = vadd.f32 %v1464, %v358
    %v1483 = vmax.f32 %v1467, 0.0
    %v1484 = vmax.f32 %v1468, 0.0
    %v1485 = vmax.f32 %v1469, 0.0
    %v1486 = vmax.f32 %v1470, 0.0
    %v1487 = vmax.f32 %v1471, 0.0
    %v1488 = vmax.f32 %v1472, 0.0
    %v1489 = vmax.f32 %v1473, 0.0
    %v1490 = vmax.f32 %v1474, 0.0
    %v1491 = vmax.f32 %v1475, 0.0
    %v1492 = vmax.f32 %v1476, 0.0
    %v1493 = vmax.f32 %v1477, 0.0
    %v1494 = vmax.f32 %v1478, 0.0
    %v1495 = vmax.f32 %v1479, 0.0
    %v1496 = vmax.f32 %v1480, 0.0
    %v1497 = vmax.f32 %v1481, 0.0
    %v1498 = vmax.f32 %v1482, 0.0
    %v1499 = vpack.c.bf16 %v1484, %v1483
    %v1500 = vpack.c.bf16 %v1486, %v1485
    %v1501 = vpack.c.bf16 %v1488, %v1487
    %v1502 = vpack.c.bf16 %v1490, %v1489
    %v1503 = vpack.c.bf16 %v1492, %v1491
    %v1504 = vpack.c.bf16 %v1494, %v1493
    %v1505 = vpack.c.bf16 %v1496, %v1495
    %v1506 = vpack.c.bf16 %v1498, %v1497
    %v1515 = vunpack.c.l.b16 %v1499
    %v1516 = vunpack.c.h.b16 %v1499
    %v1517 = vunpack.c.l.b16 %v1500
    %v1518 = vunpack.c.h.b16 %v1500
    %v1519 = vunpack.c.l.b16 %v1501
    %v1520 = vunpack.c.h.b16 %v1501
    %v1521 = vunpack.c.l.b16 %v1502
    %v1522 = vunpack.c.h.b16 %v1502
    %v1523 = vunpack.c.l.b16 %v1503
    %v1524 = vunpack.c.h.b16 %v1503
    %v1525 = vunpack.c.l.b16 %v1504
    %v1526 = vunpack.c.h.b16 %v1504
    %v1527 = vunpack.c.l.b16 %v1505
    %v1528 = vunpack.c.h.b16 %v1505
    %v1529 = vunpack.c.l.b16 %v1506
    %v1530 = vunpack.c.h.b16 %v1506
    %v1531 = vpack.c.b16 %v1515, %v1515
    %v1532 = vpack.c.b16 %v1516, %v1516
    %v1533 = vpack.c.b16 %v1517, %v1517
    %v1534 = vpack.c.b16 %v1518, %v1518
    %v1535 = vpack.c.b16 %v1519, %v1519
    %v1536 = vpack.c.b16 %v1520, %v1520
    %v1537 = vpack.c.b16 %v1521, %v1521
    %v1538 = vpack.c.b16 %v1522, %v1522
    %v1539 = vpack.c.b16 %v1523, %v1523
    %v1540 = vpack.c.b16 %v1524, %v1524
    %v1541 = vpack.c.b16 %v1525, %v1525
    %v1542 = vpack.c.b16 %v1526, %v1526
    %v1543 = vpack.c.b16 %v1527, %v1527
    %v1544 = vpack.c.b16 %v1528, %v1528
    %v1545 = vpack.c.b16 %v1529, %v1529
    %v1546 = vpack.c.b16 %v1530, %v1530
    %1563 = vst [vmem:[#allocation11] sm:$0xf] %v1531
    %1564 = vst [vmem:[#allocation11 + $0x4] sm:$0xf] %v1532
    %1565 = vst [vmem:[#allocation11 + $0x8] sm:$0xf] %v1533
    %1566 = vst [vmem:[#allocation11 + $0xc] sm:$0xf] %v1534
    %1567 = vst [vmem:[#allocation11 + $0x10] sm:$0xf] %v1535
    %1568 = vst [vmem:[#allocation11 + $0x14] sm:$0xf] %v1536
    %1569 = vst [vmem:[#allocation11 + $0x18] sm:$0xf] %v1537
    %1570 = vst [vmem:[#allocation11 + $0x1c] sm:$0xf] %v1538
    %1571 = vst [vmem:[#allocation11 + $0x20] sm:$0xf] %v1539
    %1572 = vst [vmem:[#allocation11 + $0x24] sm:$0xf] %v1540
    %1573 = vst [vmem:[#allocation11 + $0x28] sm:$0xf] %v1541
    %1574 = vst [vmem:[#allocation11 + $0x2c] sm:$0xf] %v1542
    %1575 = vst [vmem:[#allocation11 + $0x30] sm:$0xf] %v1543
    %1576 = vst [vmem:[#allocation11 + $0x34] sm:$0xf] %v1544
    %1577 = vst [vmem:[#allocation11 + $0x38] sm:$0xf] %v1545
    %1578 = vst [vmem:[#allocation11 + $0x3c] sm:$0xf] %v1546
    // Predicated region
    $region42: #{tpu_custom_call.1} parent=1 // pred_check
      _
    $region43: #{tpu_custom_call.1} parent=1 // pred_check_branch
      %1580 = sbr.rel (0) target = $region45
    $region44: #{tpu_custom_call.1} parent=1 // pred_region
      %s1582 = ssub.s32 1024, 1024
      %1583 = vsyncadd [#allocation4], %s1582
      %s1584 = sshll.u32 [#allocation11], 4
      %s1585 = int_to_ptr.vmem [resolvable:$true] %s1584
      %1590 = dma.vmem_to_hbm [thread:$0]  %s1585, 1024, %s5, [#allocation4], 64, 64, 4
    $region45: #{tpu_custom_call.1} parent=1 // pred_fallthru
      _
    // Predicated region
    $region46: #{tpu_custom_call.1} parent=1 // pred_check
      _
    $region47: #{tpu_custom_call.1} parent=1 // pred_check_branch
      %1592 = sbr.rel (0) target = $region49
    $region48: #{tpu_custom_call.1} parent=1 // pred_region
      %1593 = dma.done [#allocation4], 1024
    $region49: #{tpu_custom_call.1} parent=1 // pred_fallthru
      _
    %1594 = vsyncpa [#allocation3], 1
    %1595 = vsyncpa [#allocation6], 1
    %1596 = vsyncpa [#allocation9], 1
    %1597 = vsyncpa [#allocation4], 1

</llo_original>
